<compile_context>
chip_gen: v7x
topology: tpu7x:2x2x1
jax: 0.10.0
libtpu: 0.0.40
codegen_flags: <defaults>
</compile_context>

<pallas_src>
import jax
import jax.numpy as jnp
from jax import lax
from jax.experimental import pallas as pl
from jax.experimental.pallas import tpu as pltpu

HIDDEN_PAD = 128                       # H=100 padded to full 128-lane vreg
GATE_ORDER = (0, 1, 3, 2)              # PyTorch (i, f, g, o) -> fused (i, f, o, g)


def lstm_kernel(xw_ref, whh_ref, wlin_ref, blin_ref, out_ref):
    seq_len = xw_ref.shape[0]
    Hp = whh_ref.shape[0]              # 128

    def step(t, carry):
        h, c = carry
        # One fused recurrent matmul per step: (1, Hp) @ (Hp, 4Hp) -> (1, 4Hp),
        # plus the precomputed input projection row (bias already folded in).
        pre = xw_ref[pl.ds(t, 1), :] + jnp.dot(
            h, whh_ref[...], preferred_element_type=jnp.float32)

        # Two wide EUP passes: sigmoid on the contiguous [i|f|o] block,
        # tanh on the trailing g block (both on vreg boundaries: 384 = 3*128).
        sig = jax.nn.sigmoid(pre[:, : 3 * Hp])
        g_g = jnp.tanh(pre[:, 3 * Hp:])

        i_g = sig[:, 0:Hp]
        f_g = sig[:, Hp:2 * Hp]
        o_g = sig[:, 2 * Hp:3 * Hp]

        c_new = f_g * c + i_g * g_g
        h_new = o_g * jnp.tanh(c_new)
        return (h_new, c_new)

    h0 = jnp.zeros((1, Hp), jnp.float32)
    c0 = jnp.zeros((1, Hp), jnp.float32)
    h_last, _ = lax.fori_loop(0, seq_len, step, (h0, c0), unroll=True)

    # Final linear head on the last hidden state (module returns predictions[-1]).
    out_ref[...] = (jnp.dot(h_last, wlin_ref[...],
                            preferred_element_type=jnp.float32)
                    + blin_ref[...])


def lstm_forward(x, packed):
    """x: (seq_len,) or (seq_len, input_size). Returns (output_size,)."""
    wih_f, whh_f, b_f, wlin_p, b_lin = packed
    input_size = wih_f.shape[0]
    x2d = x.reshape(-1, input_size).astype(jnp.float32)   # == .view(len, 1, -1)

    # Hoisted input projection + fused bias: one (seq_len, 4*Hp) matmul outside
    # the serial recurrence (the K=1 matmul is pure latency inside the loop).
    xw = x2d @ wih_f + b_f

    out = pl.pallas_call(
        lstm_kernel,
        out_shape=jax.ShapeDtypeStruct((1, b_lin.shape[-1]), jnp.float32),
        in_specs=[pl.BlockSpec(memory_space=pltpu.MemorySpace.VMEM)] * 4,
        out_specs=pl.BlockSpec(memory_space=pltpu.MemorySpace.VMEM),
    )(xw, whh_f, wlin_p, b_lin)
    return out[0]                                          # predictions[-1]


def init_params(key, input_size=1, hidden=100, output=1):
    """Raw PyTorch-style params, uniform(-1/sqrt(H), 1/sqrt(H))."""
    k = 1.0 / jnp.sqrt(jnp.float32(hidden))
    ks = jax.random.split(key, 6)
    w_ih = jax.random.uniform(ks[0], (4, hidden, input_size), jnp.float32, -k, k)
    w_hh = jax.random.uniform(ks[1], (4, hidden, hidden), jnp.float32, -k, k)
    b_ih = jax.random.uniform(ks[2], (4, hidden), jnp.float32, -k, k)
    b_hh = jax.random.uniform(ks[3], (4, hidden), jnp.float32, -k, k)
    w_lin = jax.random.uniform(ks[4], (output, hidden), jnp.float32, -k, k)
    b_lin = jax.random.uniform(ks[5], (1, output), jnp.float32, -k, k)
    return w_ih, w_hh, b_ih, b_hh, w_lin, b_lin


def pack_params(raw, hidden_pad=HIDDEN_PAD):
    """Fuse gates ([i,f,o,g] order), transpose for row-vec @ matrix, pad H->Hp."""
    w_ih, w_hh, b_ih, b_hh, w_lin, b_lin = raw
    _, H, input_size = w_ih.shape
    Hp = hidden_pad
    output = w_lin.shape[0]

    wih_f = jnp.zeros((input_size, 4 * Hp), jnp.float32)
    whh_f = jnp.zeros((Hp, 4 * Hp), jnp.float32)
    b_f = jnp.zeros((1, 4 * Hp), jnp.float32)
    for slot, g in enumerate(GATE_ORDER):
        lo = slot * Hp
        wih_f = wih_f.at[:, lo:lo + H].set(w_ih[g].T)          # (in, H)
        whh_f = whh_f.at[:H, lo:lo + H].set(w_hh[g].T)         # (H, H)
        b_f = b_f.at[:, lo:lo + H].set((b_ih[g] + b_hh[g])[None, :])

    wlin_p = jnp.zeros((Hp, output), jnp.float32).at[:H, :].set(w_lin.T)
    # TODO(synk): optional bf16 cast of wih_f/whh_f for v6e/v7x MXU; kept f32 to
    # hold the 1e-5 tolerance against the f32 reference.
    return wih_f, whh_f, b_f, wlin_p, b_lin


def lstm_ref(x, raw):
    """Pure-JAX reference (unpadded, PyTorch gate order i,f,g,o)."""
    w_ih, w_hh, b_ih, b_hh, w_lin, b_lin = raw
    input_size = w_ih.shape[2]
    H = w_hh.shape[1]
    x2d = x.reshape(-1, input_size).astype(jnp.float32)
    h = jnp.zeros((1, H), jnp.float32)
    c = jnp.zeros((1, H), jnp.float32)
    for t in range(x2d.shape[0]):
        xt = x2d[t:t + 1]
        g = [xt @ w_ih[j].T + h @ w_hh[j].T + (b_ih[j] + b_hh[j])[None, :]
             for j in range(4)]
        i_g = jax.nn.sigmoid(g[0])
        f_g = jax.nn.sigmoid(g[1])
        g_g = jnp.tanh(g[2])
        o_g = jax.nn.sigmoid(g[3])
        c = f_g * c + i_g * g_g
        h = o_g * jnp.tanh(c)
    return (h @ w_lin.T + b_lin)[0]


if __name__ == "__main__":
    key = jax.random.PRNGKey(0)
    k_param, k_x = jax.random.split(key)

    seq_len, input_size, hidden, output = 8, 1, 100, 1
    raw = init_params(k_param, input_size, hidden, output)
    packed = pack_params(raw)
    x = jax.random.normal(k_x, (seq_len,), jnp.float32)    # input_seq

    pred = lstm_forward(x, packed)
    pred = jax.block_until_ready(pred)

    ref = lstm_ref(x, raw)
    assert pred.shape == (output,)
    assert jnp.allclose(pred, ref, atol=1e-5, rtol=1e-5), (pred, ref)

    print("KERNEL_OK")
</pallas_src>

<mosaic_0001>
module attributes {stable_mosaic.version = 11 : i64} {
  func.func @lstm_kernel(%arg0: memref<8x512xf32, #tpu.memory_space<vmem>>, %arg1: memref<128x512xf32, #tpu.memory_space<vmem>>, %arg2: memref<128x1xf32, #tpu.memory_space<vmem>>, %arg3: memref<1x1xf32, #tpu.memory_space<vmem>>, %arg4: memref<1x1xf32, #tpu.memory_space<vmem>>) attributes {dimension_semantics = [], scalar_prefetch = 0 : i64, scratch_operands = 0 : i64, tpu.core_type = #tpu.core_type<tc>} {
    %cst = arith.constant 0.000000e+00 : f32
    %0 = vector.broadcast %cst : f32 to vector<1x128xf32>
    %cst_0 = arith.constant 0.000000e+00 : f32
    %1 = vector.broadcast %cst_0 : f32 to vector<1x128xf32>
    %c0_i32 = arith.constant 0 : i32
    %2 = arith.index_cast %c0_i32 : i32 to index
    %c0 = arith.constant 0 : index
    %3 = vector.load %arg0[%2, %c0] : memref<8x512xf32, #tpu.memory_space<vmem>>, vector<1x512xf32>
    %c0_1 = arith.constant 0 : index
    %c0_2 = arith.constant 0 : index
    %4 = vector.load %arg1[%c0_1, %c0_2] : memref<128x512xf32, #tpu.memory_space<vmem>>, vector<128x512xf32>
    %cst_3 = arith.constant dense<0.000000e+00> : vector<1x512xf32>
    %5 = tpu.matmul %0, %4, %cst_3 {dimension_numbers = #tpu.dot_dimension_numbers<[1], [0], [0], [1], [0, 0, 1, 1], [], []>} : vector<1x128xf32>, vector<128x512xf32>, vector<1x512xf32> -> vector<1x512xf32>
    %6 = arith.addf %3, %5 : vector<1x512xf32>
    %7 = vector.extract_strided_slice %6 {offsets = [0, 0], sizes = [1, 384], strides = [1, 1]} : vector<1x512xf32> to vector<1x384xf32>
    %8 = arith.negf %7 : vector<1x384xf32>
    %9 = math.exp %8 : vector<1x384xf32>
    %cst_4 = arith.constant 1.000000e+00 : f32
    %10 = vector.broadcast %cst_4 : f32 to vector<1x384xf32>
    %11 = arith.addf %10, %9 : vector<1x384xf32>
    %12 = arith.divf %10, %11 : vector<1x384xf32>
    %13 = vector.extract_strided_slice %6 {offsets = [0, 384], sizes = [1, 128], strides = [1, 1]} : vector<1x512xf32> to vector<1x128xf32>
    %14 = math.tanh %13 : vector<1x128xf32>
    %15 = vector.extract_strided_slice %12 {offsets = [0, 0], sizes = [1, 128], strides = [1, 1]} : vector<1x384xf32> to vector<1x128xf32>
    %16 = vector.extract_strided_slice %12 {offsets = [0, 128], sizes = [1, 128], strides = [1, 1]} : vector<1x384xf32> to vector<1x128xf32>
    %17 = vector.extract_strided_slice %12 {offsets = [0, 256], sizes = [1, 128], strides = [1, 1]} : vector<1x384xf32> to vector<1x128xf32>
    %18 = arith.mulf %16, %1 : vector<1x128xf32>
    %19 = arith.mulf %15, %14 : vector<1x128xf32>
    %20 = arith.addf %18, %19 : vector<1x128xf32>
    %21 = math.tanh %20 : vector<1x128xf32>
    %22 = arith.mulf %17, %21 : vector<1x128xf32>
    %c1_i32 = arith.constant 1 : i32
    %23 = arith.index_cast %c1_i32 : i32 to index
    %c0_5 = arith.constant 0 : index
    %24 = vector.load %arg0[%23, %c0_5] : memref<8x512xf32, #tpu.memory_space<vmem>>, vector<1x512xf32>
    %c0_6 = arith.constant 0 : index
    %c0_7 = arith.constant 0 : index
    %25 = vector.load %arg1[%c0_6, %c0_7] : memref<128x512xf32, #tpu.memory_space<vmem>>, vector<128x512xf32>
    %cst_8 = arith.constant dense<0.000000e+00> : vector<1x512xf32>
    %26 = tpu.matmul %22, %25, %cst_8 {dimension_numbers = #tpu.dot_dimension_numbers<[1], [0], [0], [1], [0, 0, 1, 1], [], []>} : vector<1x128xf32>, vector<128x512xf32>, vector<1x512xf32> -> vector<1x512xf32>
    %27 = arith.addf %24, %26 : vector<1x512xf32>
    %28 = vector.extract_strided_slice %27 {offsets = [0, 0], sizes = [1, 384], strides = [1, 1]} : vector<1x512xf32> to vector<1x384xf32>
    %29 = arith.negf %28 : vector<1x384xf32>
    %30 = math.exp %29 : vector<1x384xf32>
    %cst_9 = arith.constant 1.000000e+00 : f32
    %31 = vector.broadcast %cst_9 : f32 to vector<1x384xf32>
    %32 = arith.addf %31, %30 : vector<1x384xf32>
    %33 = arith.divf %31, %32 : vector<1x384xf32>
    %34 = vector.extract_strided_slice %27 {offsets = [0, 384], sizes = [1, 128], strides = [1, 1]} : vector<1x512xf32> to vector<1x128xf32>
    %35 = math.tanh %34 : vector<1x128xf32>
    %36 = vector.extract_strided_slice %33 {offsets = [0, 0], sizes = [1, 128], strides = [1, 1]} : vector<1x384xf32> to vector<1x128xf32>
    %37 = vector.extract_strided_slice %33 {offsets = [0, 128], sizes = [1, 128], strides = [1, 1]} : vector<1x384xf32> to vector<1x128xf32>
    %38 = vector.extract_strided_slice %33 {offsets = [0, 256], sizes = [1, 128], strides = [1, 1]} : vector<1x384xf32> to vector<1x128xf32>
    %39 = arith.mulf %37, %20 : vector<1x128xf32>
    %40 = arith.mulf %36, %35 : vector<1x128xf32>
    %41 = arith.addf %39, %40 : vector<1x128xf32>
    %42 = math.tanh %41 : vector<1x128xf32>
    %43 = arith.mulf %38, %42 : vector<1x128xf32>
    %c2_i32 = arith.constant 2 : i32
    %44 = arith.index_cast %c2_i32 : i32 to index
    %c0_10 = arith.constant 0 : index
    %45 = vector.load %arg0[%44, %c0_10] : memref<8x512xf32, #tpu.memory_space<vmem>>, vector<1x512xf32>
    %c0_11 = arith.constant 0 : index
    %c0_12 = arith.constant 0 : index
    %46 = vector.load %arg1[%c0_11, %c0_12] : memref<128x512xf32, #tpu.memory_space<vmem>>, vector<128x512xf32>
    %cst_13 = arith.constant dense<0.000000e+00> : vector<1x512xf32>
    %47 = tpu.matmul %43, %46, %cst_13 {dimension_numbers = #tpu.dot_dimension_numbers<[1], [0], [0], [1], [0, 0, 1, 1], [], []>} : vector<1x128xf32>, vector<128x512xf32>, vector<1x512xf32> -> vector<1x512xf32>
    %48 = arith.addf %45, %47 : vector<1x512xf32>
    %49 = vector.extract_strided_slice %48 {offsets = [0, 0], sizes = [1, 384], strides = [1, 1]} : vector<1x512xf32> to vector<1x384xf32>
    %50 = arith.negf %49 : vector<1x384xf32>
    %51 = math.exp %50 : vector<1x384xf32>
    %cst_14 = arith.constant 1.000000e+00 : f32
    %52 = vector.broadcast %cst_14 : f32 to vector<1x384xf32>
    %53 = arith.addf %52, %51 : vector<1x384xf32>
    %54 = arith.divf %52, %53 : vector<1x384xf32>
    %55 = vector.extract_strided_slice %48 {offsets = [0, 384], sizes = [1, 128], strides = [1, 1]} : vector<1x512xf32> to vector<1x128xf32>
    %56 = math.tanh %55 : vector<1x128xf32>
    %57 = vector.extract_strided_slice %54 {offsets = [0, 0], sizes = [1, 128], strides = [1, 1]} : vector<1x384xf32> to vector<1x128xf32>
    %58 = vector.extract_strided_slice %54 {offsets = [0, 128], sizes = [1, 128], strides = [1, 1]} : vector<1x384xf32> to vector<1x128xf32>
    %59 = vector.extract_strided_slice %54 {offsets = [0, 256], sizes = [1, 128], strides = [1, 1]} : vector<1x384xf32> to vector<1x128xf32>
    %60 = arith.mulf %58, %41 : vector<1x128xf32>
    %61 = arith.mulf %57, %56 : vector<1x128xf32>
    %62 = arith.addf %60, %61 : vector<1x128xf32>
    %63 = math.tanh %62 : vector<1x128xf32>
    %64 = arith.mulf %59, %63 : vector<1x128xf32>
    %c3_i32 = arith.constant 3 : i32
    %65 = arith.index_cast %c3_i32 : i32 to index
    %c0_15 = arith.constant 0 : index
    %66 = vector.load %arg0[%65, %c0_15] : memref<8x512xf32, #tpu.memory_space<vmem>>, vector<1x512xf32>
    %c0_16 = arith.constant 0 : index
    %c0_17 = arith.constant 0 : index
    %67 = vector.load %arg1[%c0_16, %c0_17] : memref<128x512xf32, #tpu.memory_space<vmem>>, vector<128x512xf32>
    %cst_18 = arith.constant dense<0.000000e+00> : vector<1x512xf32>
    %68 = tpu.matmul %64, %67, %cst_18 {dimension_numbers = #tpu.dot_dimension_numbers<[1], [0], [0], [1], [0, 0, 1, 1], [], []>} : vector<1x128xf32>, vector<128x512xf32>, vector<1x512xf32> -> vector<1x512xf32>
    %69 = arith.addf %66, %68 : vector<1x512xf32>
    %70 = vector.extract_strided_slice %69 {offsets = [0, 0], sizes = [1, 384], strides = [1, 1]} : vector<1x512xf32> to vector<1x384xf32>
    %71 = arith.negf %70 : vector<1x384xf32>
    %72 = math.exp %71 : vector<1x384xf32>
    %cst_19 = arith.constant 1.000000e+00 : f32
    %73 = vector.broadcast %cst_19 : f32 to vector<1x384xf32>
    %74 = arith.addf %73, %72 : vector<1x384xf32>
    %75 = arith.divf %73, %74 : vector<1x384xf32>
    %76 = vector.extract_strided_slice %69 {offsets = [0, 384], sizes = [1, 128], strides = [1, 1]} : vector<1x512xf32> to vector<1x128xf32>
    %77 = math.tanh %76 : vector<1x128xf32>
    %78 = vector.extract_strided_slice %75 {offsets = [0, 0], sizes = [1, 128], strides = [1, 1]} : vector<1x384xf32> to vector<1x128xf32>
    %79 = vector.extract_strided_slice %75 {offsets = [0, 128], sizes = [1, 128], strides = [1, 1]} : vector<1x384xf32> to vector<1x128xf32>
    %80 = vector.extract_strided_slice %75 {offsets = [0, 256], sizes = [1, 128], strides = [1, 1]} : vector<1x384xf32> to vector<1x128xf32>
    %81 = arith.mulf %79, %62 : vector<1x128xf32>
    %82 = arith.mulf %78, %77 : vector<1x128xf32>
    %83 = arith.addf %81, %82 : vector<1x128xf32>
    %84 = math.tanh %83 : vector<1x128xf32>
    %85 = arith.mulf %80, %84 : vector<1x128xf32>
    %c4_i32 = arith.constant 4 : i32
    %86 = arith.index_cast %c4_i32 : i32 to index
    %c0_20 = arith.constant 0 : index
    %87 = vector.load %arg0[%86, %c0_20] : memref<8x512xf32, #tpu.memory_space<vmem>>, vector<1x512xf32>
    %c0_21 = arith.constant 0 : index
    %c0_22 = arith.constant 0 : index
    %88 = vector.load %arg1[%c0_21, %c0_22] : memref<128x512xf32, #tpu.memory_space<vmem>>, vector<128x512xf32>
    %cst_23 = arith.constant dense<0.000000e+00> : vector<1x512xf32>
    %89 = tpu.matmul %85, %88, %cst_23 {dimension_numbers = #tpu.dot_dimension_numbers<[1], [0], [0], [1], [0, 0, 1, 1], [], []>} : vector<1x128xf32>, vector<128x512xf32>, vector<1x512xf32> -> vector<1x512xf32>
    %90 = arith.addf %87, %89 : vector<1x512xf32>
    %91 = vector.extract_strided_slice %90 {offsets = [0, 0], sizes = [1, 384], strides = [1, 1]} : vector<1x512xf32> to vector<1x384xf32>
    %92 = arith.negf %91 : vector<1x384xf32>
    %93 = math.exp %92 : vector<1x384xf32>
    %cst_24 = arith.constant 1.000000e+00 : f32
    %94 = vector.broadcast %cst_24 : f32 to vector<1x384xf32>
    %95 = arith.addf %94, %93 : vector<1x384xf32>
    %96 = arith.divf %94, %95 : vector<1x384xf32>
    %97 = vector.extract_strided_slice %90 {offsets = [0, 384], sizes = [1, 128], strides = [1, 1]} : vector<1x512xf32> to vector<1x128xf32>
    %98 = math.tanh %97 : vector<1x128xf32>
    %99 = vector.extract_strided_slice %96 {offsets = [0, 0], sizes = [1, 128], strides = [1, 1]} : vector<1x384xf32> to vector<1x128xf32>
    %100 = vector.extract_strided_slice %96 {offsets = [0, 128], sizes = [1, 128], strides = [1, 1]} : vector<1x384xf32> to vector<1x128xf32>
    %101 = vector.extract_strided_slice %96 {offsets = [0, 256], sizes = [1, 128], strides = [1, 1]} : vector<1x384xf32> to vector<1x128xf32>
    %102 = arith.mulf %100, %83 : vector<1x128xf32>
    %103 = arith.mulf %99, %98 : vector<1x128xf32>
    %104 = arith.addf %102, %103 : vector<1x128xf32>
    %105 = math.tanh %104 : vector<1x128xf32>
    %106 = arith.mulf %101, %105 : vector<1x128xf32>
    %c5_i32 = arith.constant 5 : i32
    %107 = arith.index_cast %c5_i32 : i32 to index
    %c0_25 = arith.constant 0 : index
    %108 = vector.load %arg0[%107, %c0_25] : memref<8x512xf32, #tpu.memory_space<vmem>>, vector<1x512xf32>
    %c0_26 = arith.constant 0 : index
    %c0_27 = arith.constant 0 : index
    %109 = vector.load %arg1[%c0_26, %c0_27] : memref<128x512xf32, #tpu.memory_space<vmem>>, vector<128x512xf32>
    %cst_28 = arith.constant dense<0.000000e+00> : vector<1x512xf32>
    %110 = tpu.matmul %106, %109, %cst_28 {dimension_numbers = #tpu.dot_dimension_numbers<[1], [0], [0], [1], [0, 0, 1, 1], [], []>} : vector<1x128xf32>, vector<128x512xf32>, vector<1x512xf32> -> vector<1x512xf32>
    %111 = arith.addf %108, %110 : vector<1x512xf32>
    %112 = vector.extract_strided_slice %111 {offsets = [0, 0], sizes = [1, 384], strides = [1, 1]} : vector<1x512xf32> to vector<1x384xf32>
    %113 = arith.negf %112 : vector<1x384xf32>
    %114 = math.exp %113 : vector<1x384xf32>
    %cst_29 = arith.constant 1.000000e+00 : f32
    %115 = vector.broadcast %cst_29 : f32 to vector<1x384xf32>
    %116 = arith.addf %115, %114 : vector<1x384xf32>
    %117 = arith.divf %115, %116 : vector<1x384xf32>
    %118 = vector.extract_strided_slice %111 {offsets = [0, 384], sizes = [1, 128], strides = [1, 1]} : vector<1x512xf32> to vector<1x128xf32>
    %119 = math.tanh %118 : vector<1x128xf32>
    %120 = vector.extract_strided_slice %117 {offsets = [0, 0], sizes = [1, 128], strides = [1, 1]} : vector<1x384xf32> to vector<1x128xf32>
    %121 = vector.extract_strided_slice %117 {offsets = [0, 128], sizes = [1, 128], strides = [1, 1]} : vector<1x384xf32> to vector<1x128xf32>
    %122 = vector.extract_strided_slice %117 {offsets = [0, 256], sizes = [1, 128], strides = [1, 1]} : vector<1x384xf32> to vector<1x128xf32>
    %123 = arith.mulf %121, %104 : vector<1x128xf32>
    %124 = arith.mulf %120, %119 : vector<1x128xf32>
    %125 = arith.addf %123, %124 : vector<1x128xf32>
    %126 = math.tanh %125 : vector<1x128xf32>
    %127 = arith.mulf %122, %126 : vector<1x128xf32>
    %c6_i32 = arith.constant 6 : i32
    %128 = arith.index_cast %c6_i32 : i32 to index
    %c0_30 = arith.constant 0 : index
    %129 = vector.load %arg0[%128, %c0_30] : memref<8x512xf32, #tpu.memory_space<vmem>>, vector<1x512xf32>
    %c0_31 = arith.constant 0 : index
    %c0_32 = arith.constant 0 : index
    %130 = vector.load %arg1[%c0_31, %c0_32] : memref<128x512xf32, #tpu.memory_space<vmem>>, vector<128x512xf32>
    %cst_33 = arith.constant dense<0.000000e+00> : vector<1x512xf32>
    %131 = tpu.matmul %127, %130, %cst_33 {dimension_numbers = #tpu.dot_dimension_numbers<[1], [0], [0], [1], [0, 0, 1, 1], [], []>} : vector<1x128xf32>, vector<128x512xf32>, vector<1x512xf32> -> vector<1x512xf32>
    %132 = arith.addf %129, %131 : vector<1x512xf32>
    %133 = vector.extract_strided_slice %132 {offsets = [0, 0], sizes = [1, 384], strides = [1, 1]} : vector<1x512xf32> to vector<1x384xf32>
    %134 = arith.negf %133 : vector<1x384xf32>
    %135 = math.exp %134 : vector<1x384xf32>
    %cst_34 = arith.constant 1.000000e+00 : f32
    %136 = vector.broadcast %cst_34 : f32 to vector<1x384xf32>
    %137 = arith.addf %136, %135 : vector<1x384xf32>
    %138 = arith.divf %136, %137 : vector<1x384xf32>
    %139 = vector.extract_strided_slice %132 {offsets = [0, 384], sizes = [1, 128], strides = [1, 1]} : vector<1x512xf32> to vector<1x128xf32>
    %140 = math.tanh %139 : vector<1x128xf32>
    %141 = vector.extract_strided_slice %138 {offsets = [0, 0], sizes = [1, 128], strides = [1, 1]} : vector<1x384xf32> to vector<1x128xf32>
    %142 = vector.extract_strided_slice %138 {offsets = [0, 128], sizes = [1, 128], strides = [1, 1]} : vector<1x384xf32> to vector<1x128xf32>
    %143 = vector.extract_strided_slice %138 {offsets = [0, 256], sizes = [1, 128], strides = [1, 1]} : vector<1x384xf32> to vector<1x128xf32>
    %144 = arith.mulf %142, %125 : vector<1x128xf32>
    %145 = arith.mulf %141, %140 : vector<1x128xf32>
    %146 = arith.addf %144, %145 : vector<1x128xf32>
    %147 = math.tanh %146 : vector<1x128xf32>
    %148 = arith.mulf %143, %147 : vector<1x128xf32>
    %c7_i32 = arith.constant 7 : i32
    %149 = arith.index_cast %c7_i32 : i32 to index
    %c0_35 = arith.constant 0 : index
    %150 = vector.load %arg0[%149, %c0_35] : memref<8x512xf32, #tpu.memory_space<vmem>>, vector<1x512xf32>
    %c0_36 = arith.constant 0 : index
    %c0_37 = arith.constant 0 : index
    %151 = vector.load %arg1[%c0_36, %c0_37] : memref<128x512xf32, #tpu.memory_space<vmem>>, vector<128x512xf32>
    %cst_38 = arith.constant dense<0.000000e+00> : vector<1x512xf32>
    %152 = tpu.matmul %148, %151, %cst_38 {dimension_numbers = #tpu.dot_dimension_numbers<[1], [0], [0], [1], [0, 0, 1, 1], [], []>} : vector<1x128xf32>, vector<128x512xf32>, vector<1x512xf32> -> vector<1x512xf32>
    %153 = arith.addf %150, %152 : vector<1x512xf32>
    %154 = vector.extract_strided_slice %153 {offsets = [0, 0], sizes = [1, 384], strides = [1, 1]} : vector<1x512xf32> to vector<1x384xf32>
    %155 = arith.negf %154 : vector<1x384xf32>
    %156 = math.exp %155 : vector<1x384xf32>
    %cst_39 = arith.constant 1.000000e+00 : f32
    %157 = vector.broadcast %cst_39 : f32 to vector<1x384xf32>
    %158 = arith.addf %157, %156 : vector<1x384xf32>
    %159 = arith.divf %157, %158 : vector<1x384xf32>
    %160 = vector.extract_strided_slice %153 {offsets = [0, 384], sizes = [1, 128], strides = [1, 1]} : vector<1x512xf32> to vector<1x128xf32>
    %161 = math.tanh %160 : vector<1x128xf32>
    %162 = vector.extract_strided_slice %159 {offsets = [0, 0], sizes = [1, 128], strides = [1, 1]} : vector<1x384xf32> to vector<1x128xf32>
    %163 = vector.extract_strided_slice %159 {offsets = [0, 128], sizes = [1, 128], strides = [1, 1]} : vector<1x384xf32> to vector<1x128xf32>
    %164 = vector.extract_strided_slice %159 {offsets = [0, 256], sizes = [1, 128], strides = [1, 1]} : vector<1x384xf32> to vector<1x128xf32>
    %165 = arith.mulf %163, %146 : vector<1x128xf32>
    %166 = arith.mulf %162, %161 : vector<1x128xf32>
    %167 = arith.addf %165, %166 : vector<1x128xf32>
    %168 = math.tanh %167 : vector<1x128xf32>
    %169 = arith.mulf %164, %168 : vector<1x128xf32>
    %c8_i32 = arith.constant 8 : i32
    %c0_40 = arith.constant 0 : index
    %c0_41 = arith.constant 0 : index
    %170 = vector.load %arg2[%c0_40, %c0_41] : memref<128x1xf32, #tpu.memory_space<vmem>>, vector<128x1xf32>
    %cst_42 = arith.constant dense<0.000000e+00> : vector<1x1xf32>
    %171 = tpu.matmul %169, %170, %cst_42 {dimension_numbers = #tpu.dot_dimension_numbers<[1], [0], [0], [1], [0, 0, 1, 1], [], []>} : vector<1x128xf32>, vector<128x1xf32>, vector<1x1xf32> -> vector<1x1xf32>
    %c0_43 = arith.constant 0 : index
    %c0_44 = arith.constant 0 : index
    %172 = vector.load %arg3[%c0_43, %c0_44] : memref<1x1xf32, #tpu.memory_space<vmem>>, vector<1x1xf32>
    %173 = arith.addf %171, %172 : vector<1x1xf32>
    %c0_45 = arith.constant 0 : index
    %c0_46 = arith.constant 0 : index
    %174 = vector.load %arg4[%c0_45, %c0_46] : memref<1x1xf32, #tpu.memory_space<vmem>>, vector<1x1xf32>
    tpu.vector_store %arg4[%c0_45, %c0_46], %173 {strides = array<i32>} : memref<1x1xf32, #tpu.memory_space<vmem>>, vector<1x1xf32>,
    return
  }
}

</mosaic_0001>

<llo_original>
// kernel: tpu_custom_call.1
$region0: #{tpu_custom_call.1}
  #allocation0 [shape = 'u32[]', space=smem, size = 0x4, offset = 0x4, fixed_abs, tag = 'smem constant byte address 0x4 - core index']
  #allocation1 [shape = 'u32[144,128]{1,0:T(1,128)}', space=vmem, size = 0x12000, scoped, tag = 'internal scratch']
  #allocation2 [shape = 'f32[1,1]{1,0:T(1,128)S(1)}', space=vmem, size = 0x200, scoped, tag = 'scoped memory for tpu_custom_call.1']
  %s0 = inlined_call_operand.vmem [shape: f32[8,512], index: 0, kind: input, shape index: {}]
  %s1 = inlined_call_operand.hbm [shape: f32[128,512], index: 1, kind: input, shape index: {}]
  %s2 = inlined_call_operand.vmem [shape: f32[128,1], index: 2, kind: input, shape index: {}]
  %s3 = inlined_call_operand.<no memory space> [shape: f32[1,1], index: 3, kind: input, shape index: {}]
  %s4 = inlined_call_operand.hbm [shape: f32[1,1], index: 4, kind: output, shape index: {}]
  %s5 = sld [smem:[#allocation0]]
  $region30: #{tpu_custom_call.1} parent=0
    _
  %s7 = ssub.s32 1, %s5
  %s8 = scalar_select 0, %s7, %s5
  %v9 = vstv %s3
  %10 = vst [vmem:[#allocation2] sm:$0x1] %v9
  $region1: #{tpu_custom_call.1} parent=0
    #allocation3 [shape = 'u8[262144]{0}', space=vmem, size = 0x40000, scoped, tag = 'input window, operand 1, single buffered']
    #allocation4 [shape = 's32[1]{0}', space=sflag, size = 0x4, scoped, tag = 'scoped memory for tpu_custom_call.1']
    #allocation5 [shape = 's32[1]{0}', space=sflag, size = 0x4, scoped, tag = 'scoped memory for tpu_custom_call.1']
    #allocation6 [shape = 'u8[512]{0}', space=vmem, size = 0x400, scoped, tag = 'output window, operand 0, single buffered']
    %11 = vsyncpa [#allocation4], 0
    %12 = vsyncpa [#allocation5], 0
    // Predicated region
    $region2: #{tpu_custom_call.1} parent=1 // pred_check
      _
    $region3: #{tpu_custom_call.1} parent=1 // pred_check_branch
      %14 = sbr.rel (0) target = $region5
    $region4: #{tpu_custom_call.1} parent=1 // pred_region
      _
    $region5: #{tpu_custom_call.1} parent=1 // pred_fallthru
      _
    // Predicated region
    $region6: #{tpu_custom_call.1} parent=1 // pred_check
      _
    $region7: #{tpu_custom_call.1} parent=1 // pred_check_branch
      %16 = sbr.rel (0) target = $region9
    $region8: #{tpu_custom_call.1} parent=1 // pred_region
      %s18 = ssub.s32 8192, 8192
      %19 = vsyncadd [#allocation4], %s18
      %s20 = sshll.u32 [#allocation3], 4
      %s21 = int_to_ptr.vmem [resolvable:$true] %s20
      %26 = dma.hbm_to_vmem [thread:$0]  %s1, 8192, %s21, [#allocation4], 512, 512, 32
    $region9: #{tpu_custom_call.1} parent=1 // pred_fallthru
      _
    // Predicated region
    $region10: #{tpu_custom_call.1} parent=1 // pred_check
      _
    $region11: #{tpu_custom_call.1} parent=1 // pred_check_branch
      %28 = sbr.rel (0) target = $region13
    $region12: #{tpu_custom_call.1} parent=1 // pred_region
      _
    $region13: #{tpu_custom_call.1} parent=1 // pred_fallthru
      _
    // Predicated region
    $region14: #{tpu_custom_call.1} parent=1 // pred_check
      _
    $region15: #{tpu_custom_call.1} parent=1 // pred_check_branch
      %30 = sbr.rel (0) target = $region17
    $region16: #{tpu_custom_call.1} parent=1 // pred_region
      _
    $region17: #{tpu_custom_call.1} parent=1 // pred_fallthru
      _
    // Predicated region
    $region18: #{tpu_custom_call.1} parent=1 // pred_check
      _
    $region19: #{tpu_custom_call.1} parent=1 // pred_check_branch
      %32 = sbr.rel (0) target = $region21
    $region20: #{tpu_custom_call.1} parent=1 // pred_region
      %33 = dma.done [#allocation4], 8192
    $region21: #{tpu_custom_call.1} parent=1 // pred_fallthru
      _
    %v34 = vld [vmem:[%s0] ss:$8 sm:$0xf]
    %v35 = vld [vmem:[#allocation3] sm:$0xff]
    %v36 = vld [vmem:[#allocation3 + $0x8] sm:$0xff]
    %v37 = vld [vmem:[#allocation3 + $0x10] sm:$0xff]
    %v38 = vld [vmem:[#allocation3 + $0x18] sm:$0xff]
    %v39 = vld [vmem:[#allocation3 + $0x20] sm:$0xff]
    %v40 = vld [vmem:[#allocation3 + $0x28] sm:$0xff]
    %v41 = vld [vmem:[#allocation3 + $0x30] sm:$0xff]
    %v42 = vld [vmem:[#allocation3 + $0x38] sm:$0xff]
    %v43 = vld [vmem:[#allocation3 + $0x40] sm:$0xff]
    %v44 = vld [vmem:[#allocation3 + $0x48] sm:$0xff]
    %v45 = vld [vmem:[#allocation3 + $0x50] sm:$0xff]
    %v46 = vld [vmem:[#allocation3 + $0x58] sm:$0xff]
    %v47 = vld [vmem:[#allocation3 + $0x60] sm:$0xff]
    %v48 = vld [vmem:[#allocation3 + $0x68] sm:$0xff]
    %v49 = vld [vmem:[#allocation3 + $0x70] sm:$0xff]
    %v50 = vld [vmem:[#allocation3 + $0x78] sm:$0xff]
    %v51 = vld [vmem:[#allocation3 + $0x80] sm:$0xff]
    %v52 = vld [vmem:[#allocation3 + $0x88] sm:$0xff]
    %v53 = vld [vmem:[#allocation3 + $0x90] sm:$0xff]
    %v54 = vld [vmem:[#allocation3 + $0x98] sm:$0xff]
    %v55 = vld [vmem:[#allocation3 + $0xa0] sm:$0xff]
    %v56 = vld [vmem:[#allocation3 + $0xa8] sm:$0xff]
    %v57 = vld [vmem:[#allocation3 + $0xb0] sm:$0xff]
    %v58 = vld [vmem:[#allocation3 + $0xb8] sm:$0xff]
    %v59 = vld [vmem:[#allocation3 + $0xc0] sm:$0xff]
    %v60 = vld [vmem:[#allocation3 + $0xc8] sm:$0xff]
    %v61 = vld [vmem:[#allocation3 + $0xd0] sm:$0xff]
    %v62 = vld [vmem:[#allocation3 + $0xd8] sm:$0xff]
    %v63 = vld [vmem:[#allocation3 + $0xe0] sm:$0xff]
    %v64 = vld [vmem:[#allocation3 + $0xe8] sm:$0xff]
    %v65 = vld [vmem:[#allocation3 + $0xf0] sm:$0xff]
    %v66 = vld [vmem:[#allocation3 + $0xf8] sm:$0xff]
    %v67 = vld [vmem:[#allocation3 + $0x100] sm:$0xff]
    %v68 = vld [vmem:[#allocation3 + $0x108] sm:$0xff]
    %v69 = vld [vmem:[#allocation3 + $0x110] sm:$0xff]
    %v70 = vld [vmem:[#allocation3 + $0x118] sm:$0xff]
    %v71 = vld [vmem:[#allocation3 + $0x120] sm:$0xff]
    %v72 = vld [vmem:[#allocation3 + $0x128] sm:$0xff]
    %v73 = vld [vmem:[#allocation3 + $0x130] sm:$0xff]
    %v74 = vld [vmem:[#allocation3 + $0x138] sm:$0xff]
    %v75 = vld [vmem:[#allocation3 + $0x140] sm:$0xff]
    %v76 = vld [vmem:[#allocation3 + $0x148] sm:$0xff]
    %v77 = vld [vmem:[#allocation3 + $0x150] sm:$0xff]
    %v78 = vld [vmem:[#allocation3 + $0x158] sm:$0xff]
    %v79 = vld [vmem:[#allocation3 + $0x160] sm:$0xff]
    %v80 = vld [vmem:[#allocation3 + $0x168] sm:$0xff]
    %v81 = vld [vmem:[#allocation3 + $0x170] sm:$0xff]
    %v82 = vld [vmem:[#allocation3 + $0x178] sm:$0xff]
    %v83 = vld [vmem:[#allocation3 + $0x180] sm:$0xff]
    %v84 = vld [vmem:[#allocation3 + $0x188] sm:$0xff]
    %v85 = vld [vmem:[#allocation3 + $0x190] sm:$0xff]
    %v86 = vld [vmem:[#allocation3 + $0x198] sm:$0xff]
    %v87 = vld [vmem:[#allocation3 + $0x1a0] sm:$0xff]
    %v88 = vld [vmem:[#allocation3 + $0x1a8] sm:$0xff]
    %v89 = vld [vmem:[#allocation3 + $0x1b0] sm:$0xff]
    %v90 = vld [vmem:[#allocation3 + $0x1b8] sm:$0xff]
    %v91 = vld [vmem:[#allocation3 + $0x1c0] sm:$0xff]
    %v92 = vld [vmem:[#allocation3 + $0x1c8] sm:$0xff]
    %v93 = vld [vmem:[#allocation3 + $0x1d0] sm:$0xff]
    %v94 = vld [vmem:[#allocation3 + $0x1d8] sm:$0xff]
    %v95 = vld [vmem:[#allocation3 + $0x1e0] sm:$0xff]
    %v96 = vld [vmem:[#allocation3 + $0x1e8] sm:$0xff]
    %v97 = vld [vmem:[#allocation3 + $0x1f0] sm:$0xff]
    %v98 = vld [vmem:[#allocation3 + $0x1f8] sm:$0xff]
    %99 = vmatprep.subr.mxu0 %v36
    %100 = vmatpush1.msra.mxu0 %v35
    %101 = vmatprep.subr.mxu0 %v40
    %102 = vmatpush1.msra.mxu0 %v39
    %103 = vmatprep.subr.mxu0 %v44
    %104 = vmatpush1.msra.mxu0 %v43
    %105 = vmatprep.subr.mxu0 %v48
    %106 = vmatpush1.msra.mxu0 %v47
    %107 = vmatprep.subr.mxu0 %v52
    %108 = vmatpush1.msra.mxu0 %v51
    %109 = vmatprep.subr.mxu0 %v56
    %110 = vmatpush1.msra.mxu0 %v55
    %111 = vmatprep.subr.mxu0 %v60
    %112 = vmatpush1.msra.mxu0 %v59
    %113 = vmatprep.subr.mxu0 %v64
    %114 = vmatpush1.msra.mxu0 %v63
    %115 = vmatprep.subr.mxu0 %v68
    %116 = vmatpush1.msra.mxu0 %v67
    %117 = vmatprep.subr.mxu0 %v72
    %118 = vmatpush1.msra.mxu0 %v71
    %119 = vmatprep.subr.mxu0 %v76
    %120 = vmatpush1.msra.mxu0 %v75
    %121 = vmatprep.subr.mxu0 %v80
    %122 = vmatpush1.msra.mxu0 %v79
    %123 = vmatprep.subr.mxu0 %v84
    %124 = vmatpush1.msra.mxu0 %v83
    %125 = vmatprep.subr.mxu0 %v88
    %126 = vmatpush1.msra.mxu0 %v87
    %127 = vmatprep.subr.mxu0 %v92
    %128 = vmatpush1.msra.mxu0 %v91
    %129 = vmatprep.subr.mxu0 %v96
    %130 = vmatpush1.msra.mxu0 %v95
    %131 = vmatprep.subr.mxu0 0.0
    %132 = vmatpush1.msra.mxu0 0.0
    %133 = vmatprep.subr.mxu0 0.0
    %134 = vmatpush1.msra.mxu0 0.0
    %135 = vmatprep.subr.mxu0 0.0
    %136 = vmatpush1.msra.mxu0 0.0
    %137 = vmatprep.subr.mxu0 0.0
    %138 = vmatpush1.msra.mxu0 0.0
    %139 = vmatprep.subr.mxu0 0.0
    %140 = vmatpush1.msra.mxu0 0.0
    %141 = vmatprep.subr.mxu0 0.0
    %142 = vmatpush1.msra.mxu0 0.0
    %143 = vmatprep.subr.mxu0 0.0
    %144 = vmatpush1.msra.mxu0 0.0
    %145 = vmatprep.subr.mxu0 0.0
    %146 = vmatpush1.msra.mxu0 0.0
    %147 = vmatprep.subr.mxu0 0.0
    %148 = vmatpush1.msra.mxu0 0.0
    %149 = vmatprep.subr.mxu0 0.0
    %150 = vmatpush1.msra.mxu0 0.0
    %151 = vmatprep.subr.mxu0 0.0
    %152 = vmatpush1.msra.mxu0 0.0
    %153 = vmatprep.subr.mxu0 0.0
    %154 = vmatpush1.msra.mxu0 0.0
    %155 = vmatprep.subr.mxu0 0.0
    %156 = vmatpush1.msra.mxu0 0.0
    %157 = vmatprep.subr.mxu0 0.0
    %158 = vmatpush1.msra.mxu0 0.0
    %159 = vmatprep.subr.mxu0 0.0
    %160 = vmatpush1.msra.mxu0 0.0
    %161 = vmatprep.subr.mxu0 0.0
    %162 = vmatpush1.msra.mxu0 0.0
    %163 = vmatprep.mubr.f32.mxu0 0.0
    %164 = vmatmul.mubr.f32.gmra.mrb[0].mxu0 0.0
    %v165 = vpop.f32.mrb[0].mxu0
    %v166 = vadd.f32 0.0, %v165
    %v167 = vpop.f32.mrb[0].mxu0
    %v168 = vadd.f32 0.0, %v167
    %169 = vdwg.mxu0
    %170 = vmatprep.subr.mxu0 %v38
    %171 = vmatpush1.msra.mxu0 %v37
    %172 = vmatprep.subr.mxu0 %v42
    %173 = vmatpush1.msra.mxu0 %v41
    %174 = vmatprep.subr.mxu0 %v46
    %175 = vmatpush1.msra.mxu0 %v45
    %176 = vmatprep.subr.mxu0 %v50
    %177 = vmatpush1.msra.mxu0 %v49
    %178 = vmatprep.subr.mxu0 %v54
    %179 = vmatpush1.msra.mxu0 %v53
    %180 = vmatprep.subr.mxu0 %v58
    %181 = vmatpush1.msra.mxu0 %v57
    %182 = vmatprep.subr.mxu0 %v62
    %183 = vmatpush1.msra.mxu0 %v61
    %184 = vmatprep.subr.mxu0 %v66
    %185 = vmatpush1.msra.mxu0 %v65
    %186 = vmatprep.subr.mxu0 %v70
    %187 = vmatpush1.msra.mxu0 %v69
    %188 = vmatprep.subr.mxu0 %v74
    %189 = vmatpush1.msra.mxu0 %v73
    %190 = vmatprep.subr.mxu0 %v78
    %191 = vmatpush1.msra.mxu0 %v77
    %192 = vmatprep.subr.mxu0 %v82
    %193 = vmatpush1.msra.mxu0 %v81
    %194 = vmatprep.subr.mxu0 %v86
    %195 = vmatpush1.msra.mxu0 %v85
    %196 = vmatprep.subr.mxu0 %v90
    %197 = vmatpush1.msra.mxu0 %v89
    %198 = vmatprep.subr.mxu0 %v94
    %199 = vmatpush1.msra.mxu0 %v93
    %200 = vmatprep.subr.mxu0 %v98
    %201 = vmatpush1.msra.mxu0 %v97
    %202 = vmatprep.subr.mxu0 0.0
    %203 = vmatpush1.msra.mxu0 0.0
    %204 = vmatprep.subr.mxu0 0.0
    %205 = vmatpush1.msra.mxu0 0.0
    %206 = vmatprep.subr.mxu0 0.0
    %207 = vmatpush1.msra.mxu0 0.0
    %208 = vmatprep.subr.mxu0 0.0
    %209 = vmatpush1.msra.mxu0 0.0
    %210 = vmatprep.subr.mxu0 0.0
    %211 = vmatpush1.msra.mxu0 0.0
    %212 = vmatprep.subr.mxu0 0.0
    %213 = vmatpush1.msra.mxu0 0.0
    %214 = vmatprep.subr.mxu0 0.0
    %215 = vmatpush1.msra.mxu0 0.0
    %216 = vmatprep.subr.mxu0 0.0
    %217 = vmatpush1.msra.mxu0 0.0
    %218 = vmatprep.subr.mxu0 0.0
    %219 = vmatpush1.msra.mxu0 0.0
    %220 = vmatprep.subr.mxu0 0.0
    %221 = vmatpush1.msra.mxu0 0.0
    %222 = vmatprep.subr.mxu0 0.0
    %223 = vmatpush1.msra.mxu0 0.0
    %224 = vmatprep.subr.mxu0 0.0
    %225 = vmatpush1.msra.mxu0 0.0
    %226 = vmatprep.subr.mxu0 0.0
    %227 = vmatpush1.msra.mxu0 0.0
    %228 = vmatprep.subr.mxu0 0.0
    %229 = vmatpush1.msra.mxu0 0.0
    %230 = vmatprep.subr.mxu0 0.0
    %231 = vmatpush1.msra.mxu0 0.0
    %232 = vmatprep.subr.mxu0 0.0
    %233 = vmatpush1.msra.mxu0 0.0
    %234 = vmatprep.mubr.f32.mxu0 0.0
    %235 = vmatmul.mubr.f32.gmra.mrb[0].mxu0 0.0
    %v236 = vpop.f32.mrb[0].mxu0
    %v237 = vadd.f32 0.0, %v236
    %v238 = vpop.f32.mrb[0].mxu0
    %v239 = vadd.f32 0.0, %v238
    %240 = vdwg.mxu0
    %v245 = vcombine.low %v166, %v168
    %v246 = vcombine.low %v237, %v239
    %v248 = vunpack.c.l.s4 1966171168
    %v249 = vunpack.c.0.s8 %v248
    %v250 = vlaneseq
    %v251 = vshrl.u32 %v250, 7
    %v252 = vsub.s32 %v249, %v251
    %v253 = vrot.slane %v245, %v252
    %v255 = vunpack.c.l.s4 1966171168
    %v256 = vunpack.c.0.s8 %v255
    %v257 = vlaneseq
    %v258 = vshrl.u32 %v257, 7
    %v259 = vsub.s32 %v256, %v258
    %v260 = vrot.slane %v246, %v259
    %v261 = vcombine.low %v253, %v260
    %v263 = vunpack.c.l.s4 1966171168
    %v264 = vunpack.c.0.s8 %v263
    %v265 = vlaneseq
    %v266 = vshrl.u32 %v265, 7
    %v267 = vsub.s32 %v264, %v266
    %v268 = vrot.slane %v261, %v267
    %v270 = vadd.f32 %v34, %v268
    %v271 = vxor.u32 %v270, 2147483648
    %v272 = vmul.f32 %v271, 1.442695
    %v273 = vpow.pop %v272
    %v274 = vadd.f32 %v273, 1.0
    %v275 = vrcp.pop %v274
    %v276 = vmul.f32 1.0, %v275
    %v278 = vrot.slane %v270, 3
    %v280 = vtanh.pop %v278
    %v282 = vrot.slane %v276, 1
    %v284 = vmul.f32 %v282, 0.0
    %v285 = vmul.f32 %v276, %v280
    %v286 = vadd.f32 %v284, %v285
    %v287 = vtanh.pop %v286
    %v288 = vrot.slane %v276, 2
    %v290 = vmul.f32 %v288, %v287
    %s291 = scalar_lea.vmem %s0, 1
    %v292 = vld [vmem:[%s291] ss:$8 sm:$0xf]
    %293 = vmatprep.subr.mxu0 %v36
    %294 = vmatpush1.msra.mxu0 %v35
    %295 = vmatprep.subr.mxu0 %v40
    %296 = vmatpush1.msra.mxu0 %v39
    %297 = vmatprep.subr.mxu0 %v44
    %298 = vmatpush1.msra.mxu0 %v43
    %299 = vmatprep.subr.mxu0 %v48
    %300 = vmatpush1.msra.mxu0 %v47
    %301 = vmatprep.subr.mxu0 %v52
    %302 = vmatpush1.msra.mxu0 %v51
    %303 = vmatprep.subr.mxu0 %v56
    %304 = vmatpush1.msra.mxu0 %v55
    %305 = vmatprep.subr.mxu0 %v60
    %306 = vmatpush1.msra.mxu0 %v59
    %307 = vmatprep.subr.mxu0 %v64
    %308 = vmatpush1.msra.mxu0 %v63
    %309 = vmatprep.subr.mxu0 %v68
    %310 = vmatpush1.msra.mxu0 %v67
    %311 = vmatprep.subr.mxu0 %v72
    %312 = vmatpush1.msra.mxu0 %v71
    %313 = vmatprep.subr.mxu0 %v76
    %314 = vmatpush1.msra.mxu0 %v75
    %315 = vmatprep.subr.mxu0 %v80
    %316 = vmatpush1.msra.mxu0 %v79
    %317 = vmatprep.subr.mxu0 %v84
    %318 = vmatpush1.msra.mxu0 %v83
    %319 = vmatprep.subr.mxu0 %v88
    %320 = vmatpush1.msra.mxu0 %v87
    %321 = vmatprep.subr.mxu0 %v92
    %322 = vmatpush1.msra.mxu0 %v91
    %323 = vmatprep.subr.mxu0 %v96
    %324 = vmatpush1.msra.mxu0 %v95
    %325 = vmatprep.subr.mxu0 0.0
    %326 = vmatpush1.msra.mxu0 0.0
    %327 = vmatprep.subr.mxu0 0.0
    %328 = vmatpush1.msra.mxu0 0.0
    %329 = vmatprep.subr.mxu0 0.0
    %330 = vmatpush1.msra.mxu0 0.0
    %331 = vmatprep.subr.mxu0 0.0
    %332 = vmatpush1.msra.mxu0 0.0
    %333 = vmatprep.subr.mxu0 0.0
    %334 = vmatpush1.msra.mxu0 0.0
    %335 = vmatprep.subr.mxu0 0.0
    %336 = vmatpush1.msra.mxu0 0.0
    %337 = vmatprep.subr.mxu0 0.0
    %338 = vmatpush1.msra.mxu0 0.0
    %339 = vmatprep.subr.mxu0 0.0
    %340 = vmatpush1.msra.mxu0 0.0
    %341 = vmatprep.subr.mxu0 0.0
    %342 = vmatpush1.msra.mxu0 0.0
    %343 = vmatprep.subr.mxu0 0.0
    %344 = vmatpush1.msra.mxu0 0.0
    %345 = vmatprep.subr.mxu0 0.0
    %346 = vmatpush1.msra.mxu0 0.0
    %347 = vmatprep.subr.mxu0 0.0
    %348 = vmatpush1.msra.mxu0 0.0
    %349 = vmatprep.subr.mxu0 0.0
    %350 = vmatpush1.msra.mxu0 0.0
    %351 = vmatprep.subr.mxu0 0.0
    %352 = vmatpush1.msra.mxu0 0.0
    %353 = vmatprep.subr.mxu0 0.0
    %354 = vmatpush1.msra.mxu0 0.0
    %355 = vmatprep.subr.mxu0 0.0
    %356 = vmatpush1.msra.mxu0 0.0
    %357 = vmatprep.mubr.f32.mxu0 0.0
    %358 = vmatmul.mubr.f32.gmra.mrb[0].mxu0 %v290
    %v359 = vpop.f32.mrb[0].mxu0
    %v360 = vadd.f32 0.0, %v359
    %v361 = vpop.f32.mrb[0].mxu0
    %v362 = vadd.f32 0.0, %v361
    %363 = vdwg.mxu0
    %364 = vmatprep.subr.mxu0 %v38
    %365 = vmatpush1.msra.mxu0 %v37
    %366 = vmatprep.subr.mxu0 %v42
    %367 = vmatpush1.msra.mxu0 %v41
    %368 = vmatprep.subr.mxu0 %v46
    %369 = vmatpush1.msra.mxu0 %v45
    %370 = vmatprep.subr.mxu0 %v50
    %371 = vmatpush1.msra.mxu0 %v49
    %372 = vmatprep.subr.mxu0 %v54
    %373 = vmatpush1.msra.mxu0 %v53
    %374 = vmatprep.subr.mxu0 %v58
    %375 = vmatpush1.msra.mxu0 %v57
    %376 = vmatprep.subr.mxu0 %v62
    %377 = vmatpush1.msra.mxu0 %v61
    %378 = vmatprep.subr.mxu0 %v66
    %379 = vmatpush1.msra.mxu0 %v65
    %380 = vmatprep.subr.mxu0 %v70
    %381 = vmatpush1.msra.mxu0 %v69
    %382 = vmatprep.subr.mxu0 %v74
    %383 = vmatpush1.msra.mxu0 %v73
    %384 = vmatprep.subr.mxu0 %v78
    %385 = vmatpush1.msra.mxu0 %v77
    %386 = vmatprep.subr.mxu0 %v82
    %387 = vmatpush1.msra.mxu0 %v81
    %388 = vmatprep.subr.mxu0 %v86
    %389 = vmatpush1.msra.mxu0 %v85
    %390 = vmatprep.subr.mxu0 %v90
    %391 = vmatpush1.msra.mxu0 %v89
    %392 = vmatprep.subr.mxu0 %v94
    %393 = vmatpush1.msra.mxu0 %v93
    %394 = vmatprep.subr.mxu0 %v98
    %395 = vmatpush1.msra.mxu0 %v97
    %396 = vmatprep.subr.mxu0 0.0
    %397 = vmatpush1.msra.mxu0 0.0
    %398 = vmatprep.subr.mxu0 0.0
    %399 = vmatpush1.msra.mxu0 0.0
    %400 = vmatprep.subr.mxu0 0.0
    %401 = vmatpush1.msra.mxu0 0.0
    %402 = vmatprep.subr.mxu0 0.0
    %403 = vmatpush1.msra.mxu0 0.0
    %404 = vmatprep.subr.mxu0 0.0
    %405 = vmatpush1.msra.mxu0 0.0
    %406 = vmatprep.subr.mxu0 0.0
    %407 = vmatpush1.msra.mxu0 0.0
    %408 = vmatprep.subr.mxu0 0.0
    %409 = vmatpush1.msra.mxu0 0.0
    %410 = vmatprep.subr.mxu0 0.0
    %411 = vmatpush1.msra.mxu0 0.0
    %412 = vmatprep.subr.mxu0 0.0
    %413 = vmatpush1.msra.mxu0 0.0
    %414 = vmatprep.subr.mxu0 0.0
    %415 = vmatpush1.msra.mxu0 0.0
    %416 = vmatprep.subr.mxu0 0.0
    %417 = vmatpush1.msra.mxu0 0.0
    %418 = vmatprep.subr.mxu0 0.0
    %419 = vmatpush1.msra.mxu0 0.0
    %420 = vmatprep.subr.mxu0 0.0
    %421 = vmatpush1.msra.mxu0 0.0
    %422 = vmatprep.subr.mxu0 0.0
    %423 = vmatpush1.msra.mxu0 0.0
    %424 = vmatprep.subr.mxu0 0.0
    %425 = vmatpush1.msra.mxu0 0.0
    %426 = vmatprep.subr.mxu0 0.0
    %427 = vmatpush1.msra.mxu0 0.0
    %428 = vmatprep.mubr.f32.mxu0 0.0
    %429 = vmatmul.mubr.f32.gmra.mrb[0].mxu0 %v290
    %v430 = vpop.f32.mrb[0].mxu0
    %v431 = vadd.f32 0.0, %v430
    %v432 = vpop.f32.mrb[0].mxu0
    %v433 = vadd.f32 0.0, %v432
    %434 = vdwg.mxu0
    %v439 = vcombine.low %v360, %v362
    %v440 = vcombine.low %v431, %v433
    %v442 = vunpack.c.l.s4 1966171168
    %v443 = vunpack.c.0.s8 %v442
    %v444 = vlaneseq
    %v445 = vshrl.u32 %v444, 7
    %v446 = vsub.s32 %v443, %v445
    %v447 = vrot.slane %v439, %v446
    %v449 = vunpack.c.l.s4 1966171168
    %v450 = vunpack.c.0.s8 %v449
    %v451 = vlaneseq
    %v452 = vshrl.u32 %v451, 7
    %v453 = vsub.s32 %v450, %v452
    %v454 = vrot.slane %v440, %v453
    %v455 = vcombine.low %v447, %v454
    %v457 = vunpack.c.l.s4 1966171168
    %v458 = vunpack.c.0.s8 %v457
    %v459 = vlaneseq
    %v460 = vshrl.u32 %v459, 7
    %v461 = vsub.s32 %v458, %v460
    %v462 = vrot.slane %v455, %v461
    %v464 = vadd.f32 %v292, %v462
    %v465 = vxor.u32 %v464, 2147483648
    %v466 = vmul.f32 %v465, 1.442695
    %v467 = vpow.pop %v466
    %v468 = vadd.f32 %v467, 1.0
    %v469 = vrcp.pop %v468
    %v470 = vmul.f32 1.0, %v469
    %v472 = vrot.slane %v464, 3
    %v474 = vtanh.pop %v472
    %v476 = vrot.slane %v470, 1
    %v478 = vmul.f32 %v476, %v286
    %v479 = vmul.f32 %v470, %v474
    %v480 = vadd.f32 %v478, %v479
    %v481 = vtanh.pop %v480
    %v482 = vrot.slane %v470, 2
    %v484 = vmul.f32 %v482, %v481
    %s485 = scalar_lea.vmem %s0, 2
    %v486 = vld [vmem:[%s485] ss:$8 sm:$0xf]
    %487 = vmatprep.subr.mxu0 %v36
    %488 = vmatpush1.msra.mxu0 %v35
    %489 = vmatprep.subr.mxu0 %v40
    %490 = vmatpush1.msra.mxu0 %v39
    %491 = vmatprep.subr.mxu0 %v44
    %492 = vmatpush1.msra.mxu0 %v43
    %493 = vmatprep.subr.mxu0 %v48
    %494 = vmatpush1.msra.mxu0 %v47
    %495 = vmatprep.subr.mxu0 %v52
    %496 = vmatpush1.msra.mxu0 %v51
    %497 = vmatprep.subr.mxu0 %v56
    %498 = vmatpush1.msra.mxu0 %v55
    %499 = vmatprep.subr.mxu0 %v60
    %500 = vmatpush1.msra.mxu0 %v59
    %501 = vmatprep.subr.mxu0 %v64
    %502 = vmatpush1.msra.mxu0 %v63
    %503 = vmatprep.subr.mxu0 %v68
    %504 = vmatpush1.msra.mxu0 %v67
    %505 = vmatprep.subr.mxu0 %v72
    %506 = vmatpush1.msra.mxu0 %v71
    %507 = vmatprep.subr.mxu0 %v76
    %508 = vmatpush1.msra.mxu0 %v75
    %509 = vmatprep.subr.mxu0 %v80
    %510 = vmatpush1.msra.mxu0 %v79
    %511 = vmatprep.subr.mxu0 %v84
    %512 = vmatpush1.msra.mxu0 %v83
    %513 = vmatprep.subr.mxu0 %v88
    %514 = vmatpush1.msra.mxu0 %v87
    %515 = vmatprep.subr.mxu0 %v92
    %516 = vmatpush1.msra.mxu0 %v91
    %517 = vmatprep.subr.mxu0 %v96
    %518 = vmatpush1.msra.mxu0 %v95
    %519 = vmatprep.subr.mxu0 0.0
    %520 = vmatpush1.msra.mxu0 0.0
    %521 = vmatprep.subr.mxu0 0.0
    %522 = vmatpush1.msra.mxu0 0.0
    %523 = vmatprep.subr.mxu0 0.0
    %524 = vmatpush1.msra.mxu0 0.0
    %525 = vmatprep.subr.mxu0 0.0
    %526 = vmatpush1.msra.mxu0 0.0
    %527 = vmatprep.subr.mxu0 0.0
    %528 = vmatpush1.msra.mxu0 0.0
    %529 = vmatprep.subr.mxu0 0.0
    %530 = vmatpush1.msra.mxu0 0.0
    %531 = vmatprep.subr.mxu0 0.0
    %532 = vmatpush1.msra.mxu0 0.0
    %533 = vmatprep.subr.mxu0 0.0
    %534 = vmatpush1.msra.mxu0 0.0
    %535 = vmatprep.subr.mxu0 0.0
    %536 = vmatpush1.msra.mxu0 0.0
    %537 = vmatprep.subr.mxu0 0.0
    %538 = vmatpush1.msra.mxu0 0.0
    %539 = vmatprep.subr.mxu0 0.0
    %540 = vmatpush1.msra.mxu0 0.0
    %541 = vmatprep.subr.mxu0 0.0
    %542 = vmatpush1.msra.mxu0 0.0
    %543 = vmatprep.subr.mxu0 0.0
    %544 = vmatpush1.msra.mxu0 0.0
    %545 = vmatprep.subr.mxu0 0.0
    %546 = vmatpush1.msra.mxu0 0.0
    %547 = vmatprep.subr.mxu0 0.0
    %548 = vmatpush1.msra.mxu0 0.0
    %549 = vmatprep.subr.mxu0 0.0
    %550 = vmatpush1.msra.mxu0 0.0
    %551 = vmatprep.mubr.f32.mxu0 0.0
    %552 = vmatmul.mubr.f32.gmra.mrb[0].mxu0 %v484
    %v553 = vpop.f32.mrb[0].mxu0
    %v554 = vadd.f32 0.0, %v553
    %v555 = vpop.f32.mrb[0].mxu0
    %v556 = vadd.f32 0.0, %v555
    %557 = vdwg.mxu0
    %558 = vmatprep.subr.mxu0 %v38
    %559 = vmatpush1.msra.mxu0 %v37
    %560 = vmatprep.subr.mxu0 %v42
    %561 = vmatpush1.msra.mxu0 %v41
    %562 = vmatprep.subr.mxu0 %v46
    %563 = vmatpush1.msra.mxu0 %v45
    %564 = vmatprep.subr.mxu0 %v50
    %565 = vmatpush1.msra.mxu0 %v49
    %566 = vmatprep.subr.mxu0 %v54
    %567 = vmatpush1.msra.mxu0 %v53
    %568 = vmatprep.subr.mxu0 %v58
    %569 = vmatpush1.msra.mxu0 %v57
    %570 = vmatprep.subr.mxu0 %v62
    %571 = vmatpush1.msra.mxu0 %v61
    %572 = vmatprep.subr.mxu0 %v66
    %573 = vmatpush1.msra.mxu0 %v65
    %574 = vmatprep.subr.mxu0 %v70
    %575 = vmatpush1.msra.mxu0 %v69
    %576 = vmatprep.subr.mxu0 %v74
    %577 = vmatpush1.msra.mxu0 %v73
    %578 = vmatprep.subr.mxu0 %v78
    %579 = vmatpush1.msra.mxu0 %v77
    %580 = vmatprep.subr.mxu0 %v82
    %581 = vmatpush1.msra.mxu0 %v81
    %582 = vmatprep.subr.mxu0 %v86
    %583 = vmatpush1.msra.mxu0 %v85
    %584 = vmatprep.subr.mxu0 %v90
    %585 = vmatpush1.msra.mxu0 %v89
    %586 = vmatprep.subr.mxu0 %v94
    %587 = vmatpush1.msra.mxu0 %v93
    %588 = vmatprep.subr.mxu0 %v98
    %589 = vmatpush1.msra.mxu0 %v97
    %590 = vmatprep.subr.mxu0 0.0
    %591 = vmatpush1.msra.mxu0 0.0
    %592 = vmatprep.subr.mxu0 0.0
    %593 = vmatpush1.msra.mxu0 0.0
    %594 = vmatprep.subr.mxu0 0.0
    %595 = vmatpush1.msra.mxu0 0.0
    %596 = vmatprep.subr.mxu0 0.0
    %597 = vmatpush1.msra.mxu0 0.0
    %598 = vmatprep.subr.mxu0 0.0
    %599 = vmatpush1.msra.mxu0 0.0
    %600 = vmatprep.subr.mxu0 0.0
    %601 = vmatpush1.msra.mxu0 0.0
    %602 = vmatprep.subr.mxu0 0.0
    %603 = vmatpush1.msra.mxu0 0.0
    %604 = vmatprep.subr.mxu0 0.0
    %605 = vmatpush1.msra.mxu0 0.0
    %606 = vmatprep.subr.mxu0 0.0
    %607 = vmatpush1.msra.mxu0 0.0
    %608 = vmatprep.subr.mxu0 0.0
    %609 = vmatpush1.msra.mxu0 0.0
    %610 = vmatprep.subr.mxu0 0.0
    %611 = vmatpush1.msra.mxu0 0.0
    %612 = vmatprep.subr.mxu0 0.0
    %613 = vmatpush1.msra.mxu0 0.0
    %614 = vmatprep.subr.mxu0 0.0
    %615 = vmatpush1.msra.mxu0 0.0
    %616 = vmatprep.subr.mxu0 0.0
    %617 = vmatpush1.msra.mxu0 0.0
    %618 = vmatprep.subr.mxu0 0.0
    %619 = vmatpush1.msra.mxu0 0.0
    %620 = vmatprep.subr.mxu0 0.0
    %621 = vmatpush1.msra.mxu0 0.0
    %622 = vmatprep.mubr.f32.mxu0 0.0
    %623 = vmatmul.mubr.f32.gmra.mrb[0].mxu0 %v484
    %v624 = vpop.f32.mrb[0].mxu0
    %v625 = vadd.f32 0.0, %v624
    %v626 = vpop.f32.mrb[0].mxu0
    %v627 = vadd.f32 0.0, %v626
    %628 = vdwg.mxu0
    %v633 = vcombine.low %v554, %v556
    %v634 = vcombine.low %v625, %v627
    %v636 = vunpack.c.l.s4 1966171168
    %v637 = vunpack.c.0.s8 %v636
    %v638 = vlaneseq
    %v639 = vshrl.u32 %v638, 7
    %v640 = vsub.s32 %v637, %v639
    %v641 = vrot.slane %v633, %v640
    %v643 = vunpack.c.l.s4 1966171168
    %v644 = vunpack.c.0.s8 %v643
    %v645 = vlaneseq
    %v646 = vshrl.u32 %v645, 7
    %v647 = vsub.s32 %v644, %v646
    %v648 = vrot.slane %v634, %v647
    %v649 = vcombine.low %v641, %v648
    %v651 = vunpack.c.l.s4 1966171168
    %v652 = vunpack.c.0.s8 %v651
    %v653 = vlaneseq
    %v654 = vshrl.u32 %v653, 7
    %v655 = vsub.s32 %v652, %v654
    %v656 = vrot.slane %v649, %v655
    %v658 = vadd.f32 %v486, %v656
    %v659 = vxor.u32 %v658, 2147483648
    %v660 = vmul.f32 %v659, 1.442695
    %v661 = vpow.pop %v660
    %v662 = vadd.f32 %v661, 1.0
    %v663 = vrcp.pop %v662
    %v664 = vmul.f32 1.0, %v663
    %v666 = vrot.slane %v658, 3
    %v668 = vtanh.pop %v666
    %v670 = vrot.slane %v664, 1
    %v672 = vmul.f32 %v670, %v480
    %v673 = vmul.f32 %v664, %v668
    %v674 = vadd.f32 %v672, %v673
    %v675 = vtanh.pop %v674
    %v676 = vrot.slane %v664, 2
    %v678 = vmul.f32 %v676, %v675
    %s679 = scalar_lea.vmem %s0, 3
    %v680 = vld [vmem:[%s679] ss:$8 sm:$0xf]
    %681 = vmatprep.subr.mxu0 %v36
    %682 = vmatpush1.msra.mxu0 %v35
    %683 = vmatprep.subr.mxu0 %v40
    %684 = vmatpush1.msra.mxu0 %v39
    %685 = vmatprep.subr.mxu0 %v44
    %686 = vmatpush1.msra.mxu0 %v43
    %687 = vmatprep.subr.mxu0 %v48
    %688 = vmatpush1.msra.mxu0 %v47
    %689 = vmatprep.subr.mxu0 %v52
    %690 = vmatpush1.msra.mxu0 %v51
    %691 = vmatprep.subr.mxu0 %v56
    %692 = vmatpush1.msra.mxu0 %v55
    %693 = vmatprep.subr.mxu0 %v60
    %694 = vmatpush1.msra.mxu0 %v59
    %695 = vmatprep.subr.mxu0 %v64
    %696 = vmatpush1.msra.mxu0 %v63
    %697 = vmatprep.subr.mxu0 %v68
    %698 = vmatpush1.msra.mxu0 %v67
    %699 = vmatprep.subr.mxu0 %v72
    %700 = vmatpush1.msra.mxu0 %v71
    %701 = vmatprep.subr.mxu0 %v76
    %702 = vmatpush1.msra.mxu0 %v75
    %703 = vmatprep.subr.mxu0 %v80
    %704 = vmatpush1.msra.mxu0 %v79
    %705 = vmatprep.subr.mxu0 %v84
    %706 = vmatpush1.msra.mxu0 %v83
    %707 = vmatprep.subr.mxu0 %v88
    %708 = vmatpush1.msra.mxu0 %v87
    %709 = vmatprep.subr.mxu0 %v92
    %710 = vmatpush1.msra.mxu0 %v91
    %711 = vmatprep.subr.mxu0 %v96
    %712 = vmatpush1.msra.mxu0 %v95
    %713 = vmatprep.subr.mxu0 0.0
    %714 = vmatpush1.msra.mxu0 0.0
    %715 = vmatprep.subr.mxu0 0.0
    %716 = vmatpush1.msra.mxu0 0.0
    %717 = vmatprep.subr.mxu0 0.0
    %718 = vmatpush1.msra.mxu0 0.0
    %719 = vmatprep.subr.mxu0 0.0
    %720 = vmatpush1.msra.mxu0 0.0
    %721 = vmatprep.subr.mxu0 0.0
    %722 = vmatpush1.msra.mxu0 0.0
    %723 = vmatprep.subr.mxu0 0.0
    %724 = vmatpush1.msra.mxu0 0.0
    %725 = vmatprep.subr.mxu0 0.0
    %726 = vmatpush1.msra.mxu0 0.0
    %727 = vmatprep.subr.mxu0 0.0
    %728 = vmatpush1.msra.mxu0 0.0
    %729 = vmatprep.subr.mxu0 0.0
    %730 = vmatpush1.msra.mxu0 0.0
    %731 = vmatprep.subr.mxu0 0.0
    %732 = vmatpush1.msra.mxu0 0.0
    %733 = vmatprep.subr.mxu0 0.0
    %734 = vmatpush1.msra.mxu0 0.0
    %735 = vmatprep.subr.mxu0 0.0
    %736 = vmatpush1.msra.mxu0 0.0
    %737 = vmatprep.subr.mxu0 0.0
    %738 = vmatpush1.msra.mxu0 0.0
    %739 = vmatprep.subr.mxu0 0.0
    %740 = vmatpush1.msra.mxu0 0.0
    %741 = vmatprep.subr.mxu0 0.0
    %742 = vmatpush1.msra.mxu0 0.0
    %743 = vmatprep.subr.mxu0 0.0
    %744 = vmatpush1.msra.mxu0 0.0
    %745 = vmatprep.mubr.f32.mxu0 0.0
    %746 = vmatmul.mubr.f32.gmra.mrb[0].mxu0 %v678
    %v747 = vpop.f32.mrb[0].mxu0
    %v748 = vadd.f32 0.0, %v747
    %v749 = vpop.f32.mrb[0].mxu0
    %v750 = vadd.f32 0.0, %v749
    %751 = vdwg.mxu0
    %752 = vmatprep.subr.mxu0 %v38
    %753 = vmatpush1.msra.mxu0 %v37
    %754 = vmatprep.subr.mxu0 %v42
    %755 = vmatpush1.msra.mxu0 %v41
    %756 = vmatprep.subr.mxu0 %v46
    %757 = vmatpush1.msra.mxu0 %v45
    %758 = vmatprep.subr.mxu0 %v50
    %759 = vmatpush1.msra.mxu0 %v49
    %760 = vmatprep.subr.mxu0 %v54
    %761 = vmatpush1.msra.mxu0 %v53
    %762 = vmatprep.subr.mxu0 %v58
    %763 = vmatpush1.msra.mxu0 %v57
    %764 = vmatprep.subr.mxu0 %v62
    %765 = vmatpush1.msra.mxu0 %v61
    %766 = vmatprep.subr.mxu0 %v66
    %767 = vmatpush1.msra.mxu0 %v65
    %768 = vmatprep.subr.mxu0 %v70
    %769 = vmatpush1.msra.mxu0 %v69
    %770 = vmatprep.subr.mxu0 %v74
    %771 = vmatpush1.msra.mxu0 %v73
    %772 = vmatprep.subr.mxu0 %v78
    %773 = vmatpush1.msra.mxu0 %v77
    %774 = vmatprep.subr.mxu0 %v82
    %775 = vmatpush1.msra.mxu0 %v81
    %776 = vmatprep.subr.mxu0 %v86
    %777 = vmatpush1.msra.mxu0 %v85
    %778 = vmatprep.subr.mxu0 %v90
    %779 = vmatpush1.msra.mxu0 %v89
    %780 = vmatprep.subr.mxu0 %v94
    %781 = vmatpush1.msra.mxu0 %v93
    %782 = vmatprep.subr.mxu0 %v98
    %783 = vmatpush1.msra.mxu0 %v97
    %784 = vmatprep.subr.mxu0 0.0
    %785 = vmatpush1.msra.mxu0 0.0
    %786 = vmatprep.subr.mxu0 0.0
    %787 = vmatpush1.msra.mxu0 0.0
    %788 = vmatprep.subr.mxu0 0.0
    %789 = vmatpush1.msra.mxu0 0.0
    %790 = vmatprep.subr.mxu0 0.0
    %791 = vmatpush1.msra.mxu0 0.0
    %792 = vmatprep.subr.mxu0 0.0
    %793 = vmatpush1.msra.mxu0 0.0
    %794 = vmatprep.subr.mxu0 0.0
    %795 = vmatpush1.msra.mxu0 0.0
    %796 = vmatprep.subr.mxu0 0.0
    %797 = vmatpush1.msra.mxu0 0.0
    %798 = vmatprep.subr.mxu0 0.0
    %799 = vmatpush1.msra.mxu0 0.0
    %800 = vmatprep.subr.mxu0 0.0
    %801 = vmatpush1.msra.mxu0 0.0
    %802 = vmatprep.subr.mxu0 0.0
    %803 = vmatpush1.msra.mxu0 0.0
    %804 = vmatprep.subr.mxu0 0.0
    %805 = vmatpush1.msra.mxu0 0.0
    %806 = vmatprep.subr.mxu0 0.0
    %807 = vmatpush1.msra.mxu0 0.0
    %808 = vmatprep.subr.mxu0 0.0
    %809 = vmatpush1.msra.mxu0 0.0
    %810 = vmatprep.subr.mxu0 0.0
    %811 = vmatpush1.msra.mxu0 0.0
    %812 = vmatprep.subr.mxu0 0.0
    %813 = vmatpush1.msra.mxu0 0.0
    %814 = vmatprep.subr.mxu0 0.0
    %815 = vmatpush1.msra.mxu0 0.0
    %816 = vmatprep.mubr.f32.mxu0 0.0
    %817 = vmatmul.mubr.f32.gmra.mrb[0].mxu0 %v678
    %v818 = vpop.f32.mrb[0].mxu0
    %v819 = vadd.f32 0.0, %v818
    %v820 = vpop.f32.mrb[0].mxu0
    %v821 = vadd.f32 0.0, %v820
    %822 = vdwg.mxu0
    %v827 = vcombine.low %v748, %v750
    %v828 = vcombine.low %v819, %v821
    %v830 = vunpack.c.l.s4 1966171168
    %v831 = vunpack.c.0.s8 %v830
    %v832 = vlaneseq
    %v833 = vshrl.u32 %v832, 7
    %v834 = vsub.s32 %v831, %v833
    %v835 = vrot.slane %v827, %v834
    %v837 = vunpack.c.l.s4 1966171168
    %v838 = vunpack.c.0.s8 %v837
    %v839 = vlaneseq
    %v840 = vshrl.u32 %v839, 7
    %v841 = vsub.s32 %v838, %v840
    %v842 = vrot.slane %v828, %v841
    %v843 = vcombine.low %v835, %v842
    %v845 = vunpack.c.l.s4 1966171168
    %v846 = vunpack.c.0.s8 %v845
    %v847 = vlaneseq
    %v848 = vshrl.u32 %v847, 7
    %v849 = vsub.s32 %v846, %v848
    %v850 = vrot.slane %v843, %v849
    %v852 = vadd.f32 %v680, %v850
    %v853 = vxor.u32 %v852, 2147483648
    %v854 = vmul.f32 %v853, 1.442695
    %v855 = vpow.pop %v854
    %v856 = vadd.f32 %v855, 1.0
    %v857 = vrcp.pop %v856
    %v858 = vmul.f32 1.0, %v857
    %v860 = vrot.slane %v852, 3
    %v862 = vtanh.pop %v860
    %v864 = vrot.slane %v858, 1
    %v866 = vmul.f32 %v864, %v674
    %v867 = vmul.f32 %v858, %v862
    %v868 = vadd.f32 %v866, %v867
    %v869 = vtanh.pop %v868
    %v870 = vrot.slane %v858, 2
    %v872 = vmul.f32 %v870, %v869
    %s873 = scalar_lea.vmem %s0, 4
    %v874 = vld [vmem:[%s873] ss:$8 sm:$0xf]
    %875 = vmatprep.subr.mxu0 %v36
    %876 = vmatpush1.msra.mxu0 %v35
    %877 = vmatprep.subr.mxu0 %v40
    %878 = vmatpush1.msra.mxu0 %v39
    %879 = vmatprep.subr.mxu0 %v44
    %880 = vmatpush1.msra.mxu0 %v43
    %881 = vmatprep.subr.mxu0 %v48
    %882 = vmatpush1.msra.mxu0 %v47
    %883 = vmatprep.subr.mxu0 %v52
    %884 = vmatpush1.msra.mxu0 %v51
    %885 = vmatprep.subr.mxu0 %v56
    %886 = vmatpush1.msra.mxu0 %v55
    %887 = vmatprep.subr.mxu0 %v60
    %888 = vmatpush1.msra.mxu0 %v59
    %889 = vmatprep.subr.mxu0 %v64
    %890 = vmatpush1.msra.mxu0 %v63
    %891 = vmatprep.subr.mxu0 %v68
    %892 = vmatpush1.msra.mxu0 %v67
    %893 = vmatprep.subr.mxu0 %v72
    %894 = vmatpush1.msra.mxu0 %v71
    %895 = vmatprep.subr.mxu0 %v76
    %896 = vmatpush1.msra.mxu0 %v75
    %897 = vmatprep.subr.mxu0 %v80
    %898 = vmatpush1.msra.mxu0 %v79
    %899 = vmatprep.subr.mxu0 %v84
    %900 = vmatpush1.msra.mxu0 %v83
    %901 = vmatprep.subr.mxu0 %v88
    %902 = vmatpush1.msra.mxu0 %v87
    %903 = vmatprep.subr.mxu0 %v92
    %904 = vmatpush1.msra.mxu0 %v91
    %905 = vmatprep.subr.mxu0 %v96
    %906 = vmatpush1.msra.mxu0 %v95
    %907 = vmatprep.subr.mxu0 0.0
    %908 = vmatpush1.msra.mxu0 0.0
    %909 = vmatprep.subr.mxu0 0.0
    %910 = vmatpush1.msra.mxu0 0.0
    %911 = vmatprep.subr.mxu0 0.0
    %912 = vmatpush1.msra.mxu0 0.0
    %913 = vmatprep.subr.mxu0 0.0
    %914 = vmatpush1.msra.mxu0 0.0
    %915 = vmatprep.subr.mxu0 0.0
    %916 = vmatpush1.msra.mxu0 0.0
    %917 = vmatprep.subr.mxu0 0.0
    %918 = vmatpush1.msra.mxu0 0.0
    %919 = vmatprep.subr.mxu0 0.0
    %920 = vmatpush1.msra.mxu0 0.0
    %921 = vmatprep.subr.mxu0 0.0
    %922 = vmatpush1.msra.mxu0 0.0
    %923 = vmatprep.subr.mxu0 0.0
    %924 = vmatpush1.msra.mxu0 0.0
    %925 = vmatprep.subr.mxu0 0.0
    %926 = vmatpush1.msra.mxu0 0.0
    %927 = vmatprep.subr.mxu0 0.0
    %928 = vmatpush1.msra.mxu0 0.0
    %929 = vmatprep.subr.mxu0 0.0
    %930 = vmatpush1.msra.mxu0 0.0
    %931 = vmatprep.subr.mxu0 0.0
    %932 = vmatpush1.msra.mxu0 0.0
    %933 = vmatprep.subr.mxu0 0.0
    %934 = vmatpush1.msra.mxu0 0.0
    %935 = vmatprep.subr.mxu0 0.0
    %936 = vmatpush1.msra.mxu0 0.0
    %937 = vmatprep.subr.mxu0 0.0
    %938 = vmatpush1.msra.mxu0 0.0
    %939 = vmatprep.mubr.f32.mxu0 0.0
    %940 = vmatmul.mubr.f32.gmra.mrb[0].mxu0 %v872
    %v941 = vpop.f32.mrb[0].mxu0
    %v942 = vadd.f32 0.0, %v941
    %v943 = vpop.f32.mrb[0].mxu0
    %v944 = vadd.f32 0.0, %v943
    %945 = vdwg.mxu0
    %946 = vmatprep.subr.mxu0 %v38
    %947 = vmatpush1.msra.mxu0 %v37
    %948 = vmatprep.subr.mxu0 %v42
    %949 = vmatpush1.msra.mxu0 %v41
    %950 = vmatprep.subr.mxu0 %v46
    %951 = vmatpush1.msra.mxu0 %v45
    %952 = vmatprep.subr.mxu0 %v50
    %953 = vmatpush1.msra.mxu0 %v49
    %954 = vmatprep.subr.mxu0 %v54
    %955 = vmatpush1.msra.mxu0 %v53
    %956 = vmatprep.subr.mxu0 %v58
    %957 = vmatpush1.msra.mxu0 %v57
    %958 = vmatprep.subr.mxu0 %v62
    %959 = vmatpush1.msra.mxu0 %v61
    %960 = vmatprep.subr.mxu0 %v66
    %961 = vmatpush1.msra.mxu0 %v65
    %962 = vmatprep.subr.mxu0 %v70
    %963 = vmatpush1.msra.mxu0 %v69
    %964 = vmatprep.subr.mxu0 %v74
    %965 = vmatpush1.msra.mxu0 %v73
    %966 = vmatprep.subr.mxu0 %v78
    %967 = vmatpush1.msra.mxu0 %v77
    %968 = vmatprep.subr.mxu0 %v82
    %969 = vmatpush1.msra.mxu0 %v81
    %970 = vmatprep.subr.mxu0 %v86
    %971 = vmatpush1.msra.mxu0 %v85
    %972 = vmatprep.subr.mxu0 %v90
    %973 = vmatpush1.msra.mxu0 %v89
    %974 = vmatprep.subr.mxu0 %v94
    %975 = vmatpush1.msra.mxu0 %v93
    %976 = vmatprep.subr.mxu0 %v98
    %977 = vmatpush1.msra.mxu0 %v97
    %978 = vmatprep.subr.mxu0 0.0
    %979 = vmatpush1.msra.mxu0 0.0
    %980 = vmatprep.subr.mxu0 0.0
    %981 = vmatpush1.msra.mxu0 0.0
    %982 = vmatprep.subr.mxu0 0.0
    %983 = vmatpush1.msra.mxu0 0.0
    %984 = vmatprep.subr.mxu0 0.0
    %985 = vmatpush1.msra.mxu0 0.0
    %986 = vmatprep.subr.mxu0 0.0
    %987 = vmatpush1.msra.mxu0 0.0
    %988 = vmatprep.subr.mxu0 0.0
    %989 = vmatpush1.msra.mxu0 0.0
    %990 = vmatprep.subr.mxu0 0.0
    %991 = vmatpush1.msra.mxu0 0.0
    %992 = vmatprep.subr.mxu0 0.0
    %993 = vmatpush1.msra.mxu0 0.0
    %994 = vmatprep.subr.mxu0 0.0
    %995 = vmatpush1.msra.mxu0 0.0
    %996 = vmatprep.subr.mxu0 0.0
    %997 = vmatpush1.msra.mxu0 0.0
    %998 = vmatprep.subr.mxu0 0.0
    %999 = vmatpush1.msra.mxu0 0.0
    %1000 = vmatprep.subr.mxu0 0.0
    %1001 = vmatpush1.msra.mxu0 0.0
    %1002 = vmatprep.subr.mxu0 0.0
    %1003 = vmatpush1.msra.mxu0 0.0
    %1004 = vmatprep.subr.mxu0 0.0
    %1005 = vmatpush1.msra.mxu0 0.0
    %1006 = vmatprep.subr.mxu0 0.0
    %1007 = vmatpush1.msra.mxu0 0.0
    %1008 = vmatprep.subr.mxu0 0.0
    %1009 = vmatpush1.msra.mxu0 0.0
    %1010 = vmatprep.mubr.f32.mxu0 0.0
    %1011 = vmatmul.mubr.f32.gmra.mrb[0].mxu0 %v872
    %v1012 = vpop.f32.mrb[0].mxu0
    %v1013 = vadd.f32 0.0, %v1012
    %v1014 = vpop.f32.mrb[0].mxu0
    %v1015 = vadd.f32 0.0, %v1014
    %1016 = vdwg.mxu0
    %v1021 = vcombine.low %v942, %v944
    %v1022 = vcombine.low %v1013, %v1015
    %v1024 = vunpack.c.l.s4 1966171168
    %v1025 = vunpack.c.0.s8 %v1024
    %v1026 = vlaneseq
    %v1027 = vshrl.u32 %v1026, 7
    %v1028 = vsub.s32 %v1025, %v1027
    %v1029 = vrot.slane %v1021, %v1028
    %v1031 = vunpack.c.l.s4 1966171168
    %v1032 = vunpack.c.0.s8 %v1031
    %v1033 = vlaneseq
    %v1034 = vshrl.u32 %v1033, 7
    %v1035 = vsub.s32 %v1032, %v1034
    %v1036 = vrot.slane %v1022, %v1035
    %v1037 = vcombine.low %v1029, %v1036
    %v1039 = vunpack.c.l.s4 1966171168
    %v1040 = vunpack.c.0.s8 %v1039
    %v1041 = vlaneseq
    %v1042 = vshrl.u32 %v1041, 7
    %v1043 = vsub.s32 %v1040, %v1042
    %v1044 = vrot.slane %v1037, %v1043
    %v1046 = vadd.f32 %v874, %v1044
    %v1047 = vxor.u32 %v1046, 2147483648
    %v1048 = vmul.f32 %v1047, 1.442695
    %v1049 = vpow.pop %v1048
    %v1050 = vadd.f32 %v1049, 1.0
    %v1051 = vrcp.pop %v1050
    %v1052 = vmul.f32 1.0, %v1051
    %v1054 = vrot.slane %v1046, 3
    %v1056 = vtanh.pop %v1054
    %v1058 = vrot.slane %v1052, 1
    %v1060 = vmul.f32 %v1058, %v868
    %v1061 = vmul.f32 %v1052, %v1056
    %v1062 = vadd.f32 %v1060, %v1061
    %v1063 = vtanh.pop %v1062
    %v1064 = vrot.slane %v1052, 2
    %v1066 = vmul.f32 %v1064, %v1063
    %s1067 = scalar_lea.vmem %s0, 5
    %v1068 = vld [vmem:[%s1067] ss:$8 sm:$0xf]
    %1069 = vmatprep.subr.mxu0 %v36
    %1070 = vmatpush1.msra.mxu0 %v35
    %1071 = vmatprep.subr.mxu0 %v40
    %1072 = vmatpush1.msra.mxu0 %v39
    %1073 = vmatprep.subr.mxu0 %v44
    %1074 = vmatpush1.msra.mxu0 %v43
    %1075 = vmatprep.subr.mxu0 %v48
    %1076 = vmatpush1.msra.mxu0 %v47
    %1077 = vmatprep.subr.mxu0 %v52
    %1078 = vmatpush1.msra.mxu0 %v51
    %1079 = vmatprep.subr.mxu0 %v56
    %1080 = vmatpush1.msra.mxu0 %v55
    %1081 = vmatprep.subr.mxu0 %v60
    %1082 = vmatpush1.msra.mxu0 %v59
    %1083 = vmatprep.subr.mxu0 %v64
    %1084 = vmatpush1.msra.mxu0 %v63
    %1085 = vmatprep.subr.mxu0 %v68
    %1086 = vmatpush1.msra.mxu0 %v67
    %1087 = vmatprep.subr.mxu0 %v72
    %1088 = vmatpush1.msra.mxu0 %v71
    %1089 = vmatprep.subr.mxu0 %v76
    %1090 = vmatpush1.msra.mxu0 %v75
    %1091 = vmatprep.subr.mxu0 %v80
    %1092 = vmatpush1.msra.mxu0 %v79
    %1093 = vmatprep.subr.mxu0 %v84
    %1094 = vmatpush1.msra.mxu0 %v83
    %1095 = vmatprep.subr.mxu0 %v88
    %1096 = vmatpush1.msra.mxu0 %v87
    %1097 = vmatprep.subr.mxu0 %v92
    %1098 = vmatpush1.msra.mxu0 %v91
    %1099 = vmatprep.subr.mxu0 %v96
    %1100 = vmatpush1.msra.mxu0 %v95
    %1101 = vmatprep.subr.mxu0 0.0
    %1102 = vmatpush1.msra.mxu0 0.0
    %1103 = vmatprep.subr.mxu0 0.0
    %1104 = vmatpush1.msra.mxu0 0.0
    %1105 = vmatprep.subr.mxu0 0.0
    %1106 = vmatpush1.msra.mxu0 0.0
    %1107 = vmatprep.subr.mxu0 0.0
    %1108 = vmatpush1.msra.mxu0 0.0
    %1109 = vmatprep.subr.mxu0 0.0
    %1110 = vmatpush1.msra.mxu0 0.0
    %1111 = vmatprep.subr.mxu0 0.0
    %1112 = vmatpush1.msra.mxu0 0.0
    %1113 = vmatprep.subr.mxu0 0.0
    %1114 = vmatpush1.msra.mxu0 0.0
    %1115 = vmatprep.subr.mxu0 0.0
    %1116 = vmatpush1.msra.mxu0 0.0
    %1117 = vmatprep.subr.mxu0 0.0
    %1118 = vmatpush1.msra.mxu0 0.0
    %1119 = vmatprep.subr.mxu0 0.0
    %1120 = vmatpush1.msra.mxu0 0.0
    %1121 = vmatprep.subr.mxu0 0.0
    %1122 = vmatpush1.msra.mxu0 0.0
    %1123 = vmatprep.subr.mxu0 0.0
    %1124 = vmatpush1.msra.mxu0 0.0
    %1125 = vmatprep.subr.mxu0 0.0
    %1126 = vmatpush1.msra.mxu0 0.0
    %1127 = vmatprep.subr.mxu0 0.0
    %1128 = vmatpush1.msra.mxu0 0.0
    %1129 = vmatprep.subr.mxu0 0.0
    %1130 = vmatpush1.msra.mxu0 0.0
    %1131 = vmatprep.subr.mxu0 0.0
    %1132 = vmatpush1.msra.mxu0 0.0
    %1133 = vmatprep.mubr.f32.mxu0 0.0
    %1134 = vmatmul.mubr.f32.gmra.mrb[0].mxu0 %v1066
    %v1135 = vpop.f32.mrb[0].mxu0
    %v1136 = vadd.f32 0.0, %v1135
    %v1137 = vpop.f32.mrb[0].mxu0
    %v1138 = vadd.f32 0.0, %v1137
    %1139 = vdwg.mxu0
    %1140 = vmatprep.subr.mxu0 %v38
    %1141 = vmatpush1.msra.mxu0 %v37
    %1142 = vmatprep.subr.mxu0 %v42
    %1143 = vmatpush1.msra.mxu0 %v41
    %1144 = vmatprep.subr.mxu0 %v46
    %1145 = vmatpush1.msra.mxu0 %v45
    %1146 = vmatprep.subr.mxu0 %v50
    %1147 = vmatpush1.msra.mxu0 %v49
    %1148 = vmatprep.subr.mxu0 %v54
    %1149 = vmatpush1.msra.mxu0 %v53
    %1150 = vmatprep.subr.mxu0 %v58
    %1151 = vmatpush1.msra.mxu0 %v57
    %1152 = vmatprep.subr.mxu0 %v62
    %1153 = vmatpush1.msra.mxu0 %v61
    %1154 = vmatprep.subr.mxu0 %v66
    %1155 = vmatpush1.msra.mxu0 %v65
    %1156 = vmatprep.subr.mxu0 %v70
    %1157 = vmatpush1.msra.mxu0 %v69
    %1158 = vmatprep.subr.mxu0 %v74
    %1159 = vmatpush1.msra.mxu0 %v73
    %1160 = vmatprep.subr.mxu0 %v78
    %1161 = vmatpush1.msra.mxu0 %v77
    %1162 = vmatprep.subr.mxu0 %v82
    %1163 = vmatpush1.msra.mxu0 %v81
    %1164 = vmatprep.subr.mxu0 %v86
    %1165 = vmatpush1.msra.mxu0 %v85
    %1166 = vmatprep.subr.mxu0 %v90
    %1167 = vmatpush1.msra.mxu0 %v89
    %1168 = vmatprep.subr.mxu0 %v94
    %1169 = vmatpush1.msra.mxu0 %v93
    %1170 = vmatprep.subr.mxu0 %v98
    %1171 = vmatpush1.msra.mxu0 %v97
    %1172 = vmatprep.subr.mxu0 0.0
    %1173 = vmatpush1.msra.mxu0 0.0
    %1174 = vmatprep.subr.mxu0 0.0
    %1175 = vmatpush1.msra.mxu0 0.0
    %1176 = vmatprep.subr.mxu0 0.0
    %1177 = vmatpush1.msra.mxu0 0.0
    %1178 = vmatprep.subr.mxu0 0.0
    %1179 = vmatpush1.msra.mxu0 0.0
    %1180 = vmatprep.subr.mxu0 0.0
    %1181 = vmatpush1.msra.mxu0 0.0
    %1182 = vmatprep.subr.mxu0 0.0
    %1183 = vmatpush1.msra.mxu0 0.0
    %1184 = vmatprep.subr.mxu0 0.0
    %1185 = vmatpush1.msra.mxu0 0.0
    %1186 = vmatprep.subr.mxu0 0.0
    %1187 = vmatpush1.msra.mxu0 0.0
    %1188 = vmatprep.subr.mxu0 0.0
    %1189 = vmatpush1.msra.mxu0 0.0
    %1190 = vmatprep.subr.mxu0 0.0
    %1191 = vmatpush1.msra.mxu0 0.0
    %1192 = vmatprep.subr.mxu0 0.0
    %1193 = vmatpush1.msra.mxu0 0.0
    %1194 = vmatprep.subr.mxu0 0.0
    %1195 = vmatpush1.msra.mxu0 0.0
    %1196 = vmatprep.subr.mxu0 0.0
    %1197 = vmatpush1.msra.mxu0 0.0
    %1198 = vmatprep.subr.mxu0 0.0
    %1199 = vmatpush1.msra.mxu0 0.0
    %1200 = vmatprep.subr.mxu0 0.0
    %1201 = vmatpush1.msra.mxu0 0.0
    %1202 = vmatprep.subr.mxu0 0.0
    %1203 = vmatpush1.msra.mxu0 0.0
    %1204 = vmatprep.mubr.f32.mxu0 0.0
    %1205 = vmatmul.mubr.f32.gmra.mrb[0].mxu0 %v1066
    %v1206 = vpop.f32.mrb[0].mxu0
    %v1207 = vadd.f32 0.0, %v1206
    %v1208 = vpop.f32.mrb[0].mxu0
    %v1209 = vadd.f32 0.0, %v1208
    %1210 = vdwg.mxu0
    %v1215 = vcombine.low %v1136, %v1138
    %v1216 = vcombine.low %v1207, %v1209
    %v1218 = vunpack.c.l.s4 1966171168
    %v1219 = vunpack.c.0.s8 %v1218
    %v1220 = vlaneseq
    %v1221 = vshrl.u32 %v1220, 7
    %v1222 = vsub.s32 %v1219, %v1221
    %v1223 = vrot.slane %v1215, %v1222
    %v1225 = vunpack.c.l.s4 1966171168
    %v1226 = vunpack.c.0.s8 %v1225
    %v1227 = vlaneseq
    %v1228 = vshrl.u32 %v1227, 7
    %v1229 = vsub.s32 %v1226, %v1228
    %v1230 = vrot.slane %v1216, %v1229
    %v1231 = vcombine.low %v1223, %v1230
    %v1233 = vunpack.c.l.s4 1966171168
    %v1234 = vunpack.c.0.s8 %v1233
    %v1235 = vlaneseq
    %v1236 = vshrl.u32 %v1235, 7
    %v1237 = vsub.s32 %v1234, %v1236
    %v1238 = vrot.slane %v1231, %v1237
    %v1240 = vadd.f32 %v1068, %v1238
    %v1241 = vxor.u32 %v1240, 2147483648
    %v1242 = vmul.f32 %v1241, 1.442695
    %v1243 = vpow.pop %v1242
    %v1244 = vadd.f32 %v1243, 1.0
    %v1245 = vrcp.pop %v1244
    %v1246 = vmul.f32 1.0, %v1245
    %v1248 = vrot.slane %v1240, 3
    %v1250 = vtanh.pop %v1248
    %v1252 = vrot.slane %v1246, 1
    %v1254 = vmul.f32 %v1252, %v1062
    %v1255 = vmul.f32 %v1246, %v1250
    %v1256 = vadd.f32 %v1254, %v1255
    %v1257 = vtanh.pop %v1256
    %v1258 = vrot.slane %v1246, 2
    %v1260 = vmul.f32 %v1258, %v1257
    %s1261 = scalar_lea.vmem %s0, 6
    %v1262 = vld [vmem:[%s1261] ss:$8 sm:$0xf]
    %1263 = vmatprep.subr.mxu0 %v36
    %1264 = vmatpush1.msra.mxu0 %v35
    %1265 = vmatprep.subr.mxu0 %v40
    %1266 = vmatpush1.msra.mxu0 %v39
    %1267 = vmatprep.subr.mxu0 %v44
    %1268 = vmatpush1.msra.mxu0 %v43
    %1269 = vmatprep.subr.mxu0 %v48
    %1270 = vmatpush1.msra.mxu0 %v47
    %1271 = vmatprep.subr.mxu0 %v52
    %1272 = vmatpush1.msra.mxu0 %v51
    %1273 = vmatprep.subr.mxu0 %v56
    %1274 = vmatpush1.msra.mxu0 %v55
    %1275 = vmatprep.subr.mxu0 %v60
    %1276 = vmatpush1.msra.mxu0 %v59
    %1277 = vmatprep.subr.mxu0 %v64
    %1278 = vmatpush1.msra.mxu0 %v63
    %1279 = vmatprep.subr.mxu0 %v68
    %1280 = vmatpush1.msra.mxu0 %v67
    %1281 = vmatprep.subr.mxu0 %v72
    %1282 = vmatpush1.msra.mxu0 %v71
    %1283 = vmatprep.subr.mxu0 %v76
    %1284 = vmatpush1.msra.mxu0 %v75
    %1285 = vmatprep.subr.mxu0 %v80
    %1286 = vmatpush1.msra.mxu0 %v79
    %1287 = vmatprep.subr.mxu0 %v84
    %1288 = vmatpush1.msra.mxu0 %v83
    %1289 = vmatprep.subr.mxu0 %v88
    %1290 = vmatpush1.msra.mxu0 %v87
    %1291 = vmatprep.subr.mxu0 %v92
    %1292 = vmatpush1.msra.mxu0 %v91
    %1293 = vmatprep.subr.mxu0 %v96
    %1294 = vmatpush1.msra.mxu0 %v95
    %1295 = vmatprep.subr.mxu0 0.0
    %1296 = vmatpush1.msra.mxu0 0.0
    %1297 = vmatprep.subr.mxu0 0.0
    %1298 = vmatpush1.msra.mxu0 0.0
    %1299 = vmatprep.subr.mxu0 0.0
    %1300 = vmatpush1.msra.mxu0 0.0
    %1301 = vmatprep.subr.mxu0 0.0
    %1302 = vmatpush1.msra.mxu0 0.0
    %1303 = vmatprep.subr.mxu0 0.0
    %1304 = vmatpush1.msra.mxu0 0.0
    %1305 = vmatprep.subr.mxu0 0.0
    %1306 = vmatpush1.msra.mxu0 0.0
    %1307 = vmatprep.subr.mxu0 0.0
    %1308 = vmatpush1.msra.mxu0 0.0
    %1309 = vmatprep.subr.mxu0 0.0
    %1310 = vmatpush1.msra.mxu0 0.0
    %1311 = vmatprep.subr.mxu0 0.0
    %1312 = vmatpush1.msra.mxu0 0.0
    %1313 = vmatprep.subr.mxu0 0.0
    %1314 = vmatpush1.msra.mxu0 0.0
    %1315 = vmatprep.subr.mxu0 0.0
    %1316 = vmatpush1.msra.mxu0 0.0
    %1317 = vmatprep.subr.mxu0 0.0
    %1318 = vmatpush1.msra.mxu0 0.0
    %1319 = vmatprep.subr.mxu0 0.0
    %1320 = vmatpush1.msra.mxu0 0.0
    %1321 = vmatprep.subr.mxu0 0.0
    %1322 = vmatpush1.msra.mxu0 0.0
    %1323 = vmatprep.subr.mxu0 0.0
    %1324 = vmatpush1.msra.mxu0 0.0
    %1325 = vmatprep.subr.mxu0 0.0
    %1326 = vmatpush1.msra.mxu0 0.0
    %1327 = vmatprep.mubr.f32.mxu0 0.0
    %1328 = vmatmul.mubr.f32.gmra.mrb[0].mxu0 %v1260
    %v1329 = vpop.f32.mrb[0].mxu0
    %v1330 = vadd.f32 0.0, %v1329
    %v1331 = vpop.f32.mrb[0].mxu0
    %v1332 = vadd.f32 0.0, %v1331
    %1333 = vdwg.mxu0
    %1334 = vmatprep.subr.mxu0 %v38
    %1335 = vmatpush1.msra.mxu0 %v37
    %1336 = vmatprep.subr.mxu0 %v42
    %1337 = vmatpush1.msra.mxu0 %v41
    %1338 = vmatprep.subr.mxu0 %v46
    %1339 = vmatpush1.msra.mxu0 %v45
    %1340 = vmatprep.subr.mxu0 %v50
    %1341 = vmatpush1.msra.mxu0 %v49
    %1342 = vmatprep.subr.mxu0 %v54
    %1343 = vmatpush1.msra.mxu0 %v53
    %1344 = vmatprep.subr.mxu0 %v58
    %1345 = vmatpush1.msra.mxu0 %v57
    %1346 = vmatprep.subr.mxu0 %v62
    %1347 = vmatpush1.msra.mxu0 %v61
    %1348 = vmatprep.subr.mxu0 %v66
    %1349 = vmatpush1.msra.mxu0 %v65
    %1350 = vmatprep.subr.mxu0 %v70
    %1351 = vmatpush1.msra.mxu0 %v69
    %1352 = vmatprep.subr.mxu0 %v74
    %1353 = vmatpush1.msra.mxu0 %v73
    %1354 = vmatprep.subr.mxu0 %v78
    %1355 = vmatpush1.msra.mxu0 %v77
    %1356 = vmatprep.subr.mxu0 %v82
    %1357 = vmatpush1.msra.mxu0 %v81
    %1358 = vmatprep.subr.mxu0 %v86
    %1359 = vmatpush1.msra.mxu0 %v85
    %1360 = vmatprep.subr.mxu0 %v90
    %1361 = vmatpush1.msra.mxu0 %v89
    %1362 = vmatprep.subr.mxu0 %v94
    %1363 = vmatpush1.msra.mxu0 %v93
    %1364 = vmatprep.subr.mxu0 %v98
    %1365 = vmatpush1.msra.mxu0 %v97
    %1366 = vmatprep.subr.mxu0 0.0
    %1367 = vmatpush1.msra.mxu0 0.0
    %1368 = vmatprep.subr.mxu0 0.0
    %1369 = vmatpush1.msra.mxu0 0.0
    %1370 = vmatprep.subr.mxu0 0.0
    %1371 = vmatpush1.msra.mxu0 0.0
    %1372 = vmatprep.subr.mxu0 0.0
    %1373 = vmatpush1.msra.mxu0 0.0
    %1374 = vmatprep.subr.mxu0 0.0
    %1375 = vmatpush1.msra.mxu0 0.0
    %1376 = vmatprep.subr.mxu0 0.0
    %1377 = vmatpush1.msra.mxu0 0.0
    %1378 = vmatprep.subr.mxu0 0.0
    %1379 = vmatpush1.msra.mxu0 0.0
    %1380 = vmatprep.subr.mxu0 0.0
    %1381 = vmatpush1.msra.mxu0 0.0
    %1382 = vmatprep.subr.mxu0 0.0
    %1383 = vmatpush1.msra.mxu0 0.0
    %1384 = vmatprep.subr.mxu0 0.0
    %1385 = vmatpush1.msra.mxu0 0.0
    %1386 = vmatprep.subr.mxu0 0.0
    %1387 = vmatpush1.msra.mxu0 0.0
    %1388 = vmatprep.subr.mxu0 0.0
    %1389 = vmatpush1.msra.mxu0 0.0
    %1390 = vmatprep.subr.mxu0 0.0
    %1391 = vmatpush1.msra.mxu0 0.0
    %1392 = vmatprep.subr.mxu0 0.0
    %1393 = vmatpush1.msra.mxu0 0.0
    %1394 = vmatprep.subr.mxu0 0.0
    %1395 = vmatpush1.msra.mxu0 0.0
    %1396 = vmatprep.subr.mxu0 0.0
    %1397 = vmatpush1.msra.mxu0 0.0
    %1398 = vmatprep.mubr.f32.mxu0 0.0
    %1399 = vmatmul.mubr.f32.gmra.mrb[0].mxu0 %v1260
    %v1400 = vpop.f32.mrb[0].mxu0
    %v1401 = vadd.f32 0.0, %v1400
    %v1402 = vpop.f32.mrb[0].mxu0
    %v1403 = vadd.f32 0.0, %v1402
    %1404 = vdwg.mxu0
    %v1409 = vcombine.low %v1330, %v1332
    %v1410 = vcombine.low %v1401, %v1403
    %v1412 = vunpack.c.l.s4 1966171168
    %v1413 = vunpack.c.0.s8 %v1412
    %v1414 = vlaneseq
    %v1415 = vshrl.u32 %v1414, 7
    %v1416 = vsub.s32 %v1413, %v1415
    %v1417 = vrot.slane %v1409, %v1416
    %v1419 = vunpack.c.l.s4 1966171168
    %v1420 = vunpack.c.0.s8 %v1419
    %v1421 = vlaneseq
    %v1422 = vshrl.u32 %v1421, 7
    %v1423 = vsub.s32 %v1420, %v1422
    %v1424 = vrot.slane %v1410, %v1423
    %v1425 = vcombine.low %v1417, %v1424
    %v1427 = vunpack.c.l.s4 1966171168
    %v1428 = vunpack.c.0.s8 %v1427
    %v1429 = vlaneseq
    %v1430 = vshrl.u32 %v1429, 7
    %v1431 = vsub.s32 %v1428, %v1430
    %v1432 = vrot.slane %v1425, %v1431
    %v1434 = vadd.f32 %v1262, %v1432
    %v1435 = vxor.u32 %v1434, 2147483648
    %v1436 = vmul.f32 %v1435, 1.442695
    %v1437 = vpow.pop %v1436
    %v1438 = vadd.f32 %v1437, 1.0
    %v1439 = vrcp.pop %v1438
    %v1440 = vmul.f32 1.0, %v1439
    %v1442 = vrot.slane %v1434, 3
    %v1444 = vtanh.pop %v1442
    %v1446 = vrot.slane %v1440, 1
    %v1448 = vmul.f32 %v1446, %v1256
    %v1449 = vmul.f32 %v1440, %v1444
    %v1450 = vadd.f32 %v1448, %v1449
    %v1451 = vtanh.pop %v1450
    %v1452 = vrot.slane %v1440, 2
    %v1454 = vmul.f32 %v1452, %v1451
    %s1455 = scalar_lea.vmem %s0, 7
    %v1456 = vld [vmem:[%s1455] ss:$8 sm:$0xf]
    %1457 = vmatprep.subr.mxu0 %v36
    %1458 = vmatpush1.msra.mxu0 %v35
    %1459 = vmatprep.subr.mxu0 %v40
    %1460 = vmatpush1.msra.mxu0 %v39
    %1461 = vmatprep.subr.mxu0 %v44
    %1462 = vmatpush1.msra.mxu0 %v43
    %1463 = vmatprep.subr.mxu0 %v48
    %1464 = vmatpush1.msra.mxu0 %v47
    %1465 = vmatprep.subr.mxu0 %v52
    %1466 = vmatpush1.msra.mxu0 %v51
    %1467 = vmatprep.subr.mxu0 %v56
    %1468 = vmatpush1.msra.mxu0 %v55
    %1469 = vmatprep.subr.mxu0 %v60
    %1470 = vmatpush1.msra.mxu0 %v59
    %1471 = vmatprep.subr.mxu0 %v64
    %1472 = vmatpush1.msra.mxu0 %v63
    %1473 = vmatprep.subr.mxu0 %v68
    %1474 = vmatpush1.msra.mxu0 %v67
    %1475 = vmatprep.subr.mxu0 %v72
    %1476 = vmatpush1.msra.mxu0 %v71
    %1477 = vmatprep.subr.mxu0 %v76
    %1478 = vmatpush1.msra.mxu0 %v75
    %1479 = vmatprep.subr.mxu0 %v80
    %1480 = vmatpush1.msra.mxu0 %v79
    %1481 = vmatprep.subr.mxu0 %v84
    %1482 = vmatpush1.msra.mxu0 %v83
    %1483 = vmatprep.subr.mxu0 %v88
    %1484 = vmatpush1.msra.mxu0 %v87
    %1485 = vmatprep.subr.mxu0 %v92
    %1486 = vmatpush1.msra.mxu0 %v91
    %1487 = vmatprep.subr.mxu0 %v96
    %1488 = vmatpush1.msra.mxu0 %v95
    %1489 = vmatprep.subr.mxu0 0.0
    %1490 = vmatpush1.msra.mxu0 0.0
    %1491 = vmatprep.subr.mxu0 0.0
    %1492 = vmatpush1.msra.mxu0 0.0
    %1493 = vmatprep.subr.mxu0 0.0
    %1494 = vmatpush1.msra.mxu0 0.0
    %1495 = vmatprep.subr.mxu0 0.0
    %1496 = vmatpush1.msra.mxu0 0.0
    %1497 = vmatprep.subr.mxu0 0.0
    %1498 = vmatpush1.msra.mxu0 0.0
    %1499 = vmatprep.subr.mxu0 0.0
    %1500 = vmatpush1.msra.mxu0 0.0
    %1501 = vmatprep.subr.mxu0 0.0
    %1502 = vmatpush1.msra.mxu0 0.0
    %1503 = vmatprep.subr.mxu0 0.0
    %1504 = vmatpush1.msra.mxu0 0.0
    %1505 = vmatprep.subr.mxu0 0.0
    %1506 = vmatpush1.msra.mxu0 0.0
    %1507 = vmatprep.subr.mxu0 0.0
    %1508 = vmatpush1.msra.mxu0 0.0
    %1509 = vmatprep.subr.mxu0 0.0
    %1510 = vmatpush1.msra.mxu0 0.0
    %1511 = vmatprep.subr.mxu0 0.0
    %1512 = vmatpush1.msra.mxu0 0.0
    %1513 = vmatprep.subr.mxu0 0.0
    %1514 = vmatpush1.msra.mxu0 0.0
    %1515 = vmatprep.subr.mxu0 0.0
    %1516 = vmatpush1.msra.mxu0 0.0
    %1517 = vmatprep.subr.mxu0 0.0
    %1518 = vmatpush1.msra.mxu0 0.0
    %1519 = vmatprep.subr.mxu0 0.0
    %1520 = vmatpush1.msra.mxu0 0.0
    %1521 = vmatprep.mubr.f32.mxu0 0.0
    %1522 = vmatmul.mubr.f32.gmra.mrb[0].mxu0 %v1454
    %v1523 = vpop.f32.mrb[0].mxu0
    %v1524 = vadd.f32 0.0, %v1523
    %v1525 = vpop.f32.mrb[0].mxu0
    %v1526 = vadd.f32 0.0, %v1525
    %1527 = vdwg.mxu0
    %1528 = vmatprep.subr.mxu0 %v38
    %1529 = vmatpush1.msra.mxu0 %v37
    %1530 = vmatprep.subr.mxu0 %v42
    %1531 = vmatpush1.msra.mxu0 %v41
    %1532 = vmatprep.subr.mxu0 %v46
    %1533 = vmatpush1.msra.mxu0 %v45
    %1534 = vmatprep.subr.mxu0 %v50
    %1535 = vmatpush1.msra.mxu0 %v49
    %1536 = vmatprep.subr.mxu0 %v54
    %1537 = vmatpush1.msra.mxu0 %v53
    %1538 = vmatprep.subr.mxu0 %v58
    %1539 = vmatpush1.msra.mxu0 %v57
    %1540 = vmatprep.subr.mxu0 %v62
    %1541 = vmatpush1.msra.mxu0 %v61
    %1542 = vmatprep.subr.mxu0 %v66
    %1543 = vmatpush1.msra.mxu0 %v65
    %1544 = vmatprep.subr.mxu0 %v70
    %1545 = vmatpush1.msra.mxu0 %v69
    %1546 = vmatprep.subr.mxu0 %v74
    %1547 = vmatpush1.msra.mxu0 %v73
    %1548 = vmatprep.subr.mxu0 %v78
    %1549 = vmatpush1.msra.mxu0 %v77
    %1550 = vmatprep.subr.mxu0 %v82
    %1551 = vmatpush1.msra.mxu0 %v81
    %1552 = vmatprep.subr.mxu0 %v86
    %1553 = vmatpush1.msra.mxu0 %v85
    %1554 = vmatprep.subr.mxu0 %v90
    %1555 = vmatpush1.msra.mxu0 %v89
    %1556 = vmatprep.subr.mxu0 %v94
    %1557 = vmatpush1.msra.mxu0 %v93
    %1558 = vmatprep.subr.mxu0 %v98
    %1559 = vmatpush1.msra.mxu0 %v97
    %1560 = vmatprep.subr.mxu0 0.0
    %1561 = vmatpush1.msra.mxu0 0.0
    %1562 = vmatprep.subr.mxu0 0.0
    %1563 = vmatpush1.msra.mxu0 0.0
    %1564 = vmatprep.subr.mxu0 0.0
    %1565 = vmatpush1.msra.mxu0 0.0
    %1566 = vmatprep.subr.mxu0 0.0
    %1567 = vmatpush1.msra.mxu0 0.0
    %1568 = vmatprep.subr.mxu0 0.0
    %1569 = vmatpush1.msra.mxu0 0.0
    %1570 = vmatprep.subr.mxu0 0.0
    %1571 = vmatpush1.msra.mxu0 0.0
    %1572 = vmatprep.subr.mxu0 0.0
    %1573 = vmatpush1.msra.mxu0 0.0
    %1574 = vmatprep.subr.mxu0 0.0
    %1575 = vmatpush1.msra.mxu0 0.0
    %1576 = vmatprep.subr.mxu0 0.0
    %1577 = vmatpush1.msra.mxu0 0.0
    %1578 = vmatprep.subr.mxu0 0.0
    %1579 = vmatpush1.msra.mxu0 0.0
    %1580 = vmatprep.subr.mxu0 0.0
    %1581 = vmatpush1.msra.mxu0 0.0
    %1582 = vmatprep.subr.mxu0 0.0
    %1583 = vmatpush1.msra.mxu0 0.0
    %1584 = vmatprep.subr.mxu0 0.0
    %1585 = vmatpush1.msra.mxu0 0.0
    %1586 = vmatprep.subr.mxu0 0.0
    %1587 = vmatpush1.msra.mxu0 0.0
    %1588 = vmatprep.subr.mxu0 0.0
    %1589 = vmatpush1.msra.mxu0 0.0
    %1590 = vmatprep.subr.mxu0 0.0
    %1591 = vmatpush1.msra.mxu0 0.0
    %1592 = vmatprep.mubr.f32.mxu0 0.0
    %1593 = vmatmul.mubr.f32.gmra.mrb[0].mxu0 %v1454
    %v1594 = vpop.f32.mrb[0].mxu0
    %v1595 = vadd.f32 0.0, %v1594
    %v1596 = vpop.f32.mrb[0].mxu0
    %v1597 = vadd.f32 0.0, %v1596
    %1598 = vdwg.mxu0
    %v1603 = vcombine.low %v1524, %v1526
    %v1604 = vcombine.low %v1595, %v1597
    %v1606 = vunpack.c.l.s4 1966171168
    %v1607 = vunpack.c.0.s8 %v1606
    %v1608 = vlaneseq
    %v1609 = vshrl.u32 %v1608, 7
    %v1610 = vsub.s32 %v1607, %v1609
    %v1611 = vrot.slane %v1603, %v1610
    %v1613 = vunpack.c.l.s4 1966171168
    %v1614 = vunpack.c.0.s8 %v1613
    %v1615 = vlaneseq
    %v1616 = vshrl.u32 %v1615, 7
    %v1617 = vsub.s32 %v1614, %v1616
    %v1618 = vrot.slane %v1604, %v1617
    %v1619 = vcombine.low %v1611, %v1618
    %v1621 = vunpack.c.l.s4 1966171168
    %v1622 = vunpack.c.0.s8 %v1621
    %v1623 = vlaneseq
    %v1624 = vshrl.u32 %v1623, 7
    %v1625 = vsub.s32 %v1622, %v1624
    %v1626 = vrot.slane %v1619, %v1625
    %v1628 = vadd.f32 %v1456, %v1626
    %v1629 = vxor.u32 %v1628, 2147483648
    %v1630 = vmul.f32 %v1629, 1.442695
    %v1631 = vpow.pop %v1630
    %v1632 = vadd.f32 %v1631, 1.0
    %v1633 = vrcp.pop %v1632
    %v1634 = vmul.f32 1.0, %v1633
    %v1636 = vrot.slane %v1628, 3
    %v1638 = vtanh.pop %v1636
    %v1640 = vrot.slane %v1634, 1
    %v1642 = vmul.f32 %v1640, %v1450
    %v1643 = vmul.f32 %v1634, %v1638
    %v1644 = vadd.f32 %v1642, %v1643
    %v1645 = vtanh.pop %v1644
    %v1646 = vrot.slane %v1634, 2
    %v1648 = vmul.f32 %v1646, %v1645
    %v1649 = vld [vmem:[%s2] sm:$0xff]
    %v1650 = vld [vmem:[%s2 + $0x8] sm:$0xff]
    %v1651 = vld [vmem:[%s2 + $0x10] sm:$0xff]
    %v1652 = vld [vmem:[%s2 + $0x18] sm:$0xff]
    %v1653 = vld [vmem:[%s2 + $0x20] sm:$0xff]
    %v1654 = vld [vmem:[%s2 + $0x28] sm:$0xff]
    %v1655 = vld [vmem:[%s2 + $0x30] sm:$0xff]
    %v1656 = vld [vmem:[%s2 + $0x38] sm:$0xff]
    %v1657 = vld [vmem:[%s2 + $0x40] sm:$0xff]
    %v1658 = vld [vmem:[%s2 + $0x48] sm:$0xff]
    %v1659 = vld [vmem:[%s2 + $0x50] sm:$0xff]
    %v1660 = vld [vmem:[%s2 + $0x58] sm:$0xff]
    %v1661 = vld [vmem:[%s2 + $0x60] sm:$0xff]
    %v1662 = vld [vmem:[%s2 + $0x68] sm:$0xff]
    %v1663 = vld [vmem:[%s2 + $0x70] sm:$0xff]
    %v1664 = vld [vmem:[%s2 + $0x78] sm:$0xff]
    %v1665 = vld [vmem:[#allocation2] sm:$0x1]
    %1666 = vmatprep.subr.mxu0 0.0
    %1667 = vmatpush1.msra.mxu0 %v1649
    %1668 = vmatprep.subr.mxu0 0.0
    %1669 = vmatpush1.msra.mxu0 %v1650
    %1670 = vmatprep.subr.mxu0 0.0
    %1671 = vmatpush1.msra.mxu0 %v1651
    %1672 = vmatprep.subr.mxu0 0.0
    %1673 = vmatpush1.msra.mxu0 %v1652
    %1674 = vmatprep.subr.mxu0 0.0
    %1675 = vmatpush1.msra.mxu0 %v1653
    %1676 = vmatprep.subr.mxu0 0.0
    %1677 = vmatpush1.msra.mxu0 %v1654
    %1678 = vmatprep.subr.mxu0 0.0
    %1679 = vmatpush1.msra.mxu0 %v1655
    %1680 = vmatprep.subr.mxu0 0.0
    %1681 = vmatpush1.msra.mxu0 %v1656
    %1682 = vmatprep.subr.mxu0 0.0
    %1683 = vmatpush1.msra.mxu0 %v1657
    %1684 = vmatprep.subr.mxu0 0.0
    %1685 = vmatpush1.msra.mxu0 %v1658
    %1686 = vmatprep.subr.mxu0 0.0
    %1687 = vmatpush1.msra.mxu0 %v1659
    %1688 = vmatprep.subr.mxu0 0.0
    %1689 = vmatpush1.msra.mxu0 %v1660
    %1690 = vmatprep.subr.mxu0 0.0
    %1691 = vmatpush1.msra.mxu0 %v1661
    %1692 = vmatprep.subr.mxu0 0.0
    %1693 = vmatpush1.msra.mxu0 %v1662
    %1694 = vmatprep.subr.mxu0 0.0
    %1695 = vmatpush1.msra.mxu0 %v1663
    %1696 = vmatprep.subr.mxu0 0.0
    %1697 = vmatpush1.msra.mxu0 %v1664
    %1698 = vmatprep.subr.mxu0 0.0
    %1699 = vmatpush1.msra.mxu0 0.0
    %1700 = vmatprep.subr.mxu0 0.0
    %1701 = vmatpush1.msra.mxu0 0.0
    %1702 = vmatprep.subr.mxu0 0.0
    %1703 = vmatpush1.msra.mxu0 0.0
    %1704 = vmatprep.subr.mxu0 0.0
    %1705 = vmatpush1.msra.mxu0 0.0
    %1706 = vmatprep.subr.mxu0 0.0
    %1707 = vmatpush1.msra.mxu0 0.0
    %1708 = vmatprep.subr.mxu0 0.0
    %1709 = vmatpush1.msra.mxu0 0.0
    %1710 = vmatprep.subr.mxu0 0.0
    %1711 = vmatpush1.msra.mxu0 0.0
    %1712 = vmatprep.subr.mxu0 0.0
    %1713 = vmatpush1.msra.mxu0 0.0
    %1714 = vmatprep.subr.mxu0 0.0
    %1715 = vmatpush1.msra.mxu0 0.0
    %1716 = vmatprep.subr.mxu0 0.0
    %1717 = vmatpush1.msra.mxu0 0.0
    %1718 = vmatprep.subr.mxu0 0.0
    %1719 = vmatpush1.msra.mxu0 0.0
    %1720 = vmatprep.subr.mxu0 0.0
    %1721 = vmatpush1.msra.mxu0 0.0
    %1722 = vmatprep.subr.mxu0 0.0
    %1723 = vmatpush1.msra.mxu0 0.0
    %1724 = vmatprep.subr.mxu0 0.0
    %1725 = vmatpush1.msra.mxu0 0.0
    %1726 = vmatprep.subr.mxu0 0.0
    %1727 = vmatpush1.msra.mxu0 0.0
    %1728 = vmatprep.subr.mxu0 0.0
    %1729 = vmatpush1.msra.mxu0 0.0
    %1730 = vmatprep.mubr.f32.mxu0 0.0
    %1731 = vmatmul.mubr.f32.gmra.mrb[0].mxu0 %v1648
    %v1732 = vpop.f32.mrb[0].mxu0
    %v1733 = vadd.f32 %v1665, %v1732
    %v1734 = vpop.f32.mrb[0].mxu0
    %1735 = vdwg.mxu0
    %vm1736 = vcmask 0
    %1737 = vst.msk [vmem:[#allocation6] sm:$0x1] %vm1736, %v1733
    // Predicated region
    $region22: #{tpu_custom_call.1} parent=1 // pred_check
      _
    $region23: #{tpu_custom_call.1} parent=1 // pred_check_branch
      %1739 = sbr.rel (0) target = $region25
    $region24: #{tpu_custom_call.1} parent=1 // pred_region
      %s1741 = ssub.s32 16, 16
      %1742 = vsyncadd [#allocation5], %s1741
      %s1744 = sshll.u32 [#allocation6], 4
      %s1745 = int_to_ptr.vmem [resolvable:$true] %s1744
      %1747 = dma.vmem_to_hbm [thread:$0]  %s1745, 16, %s4, [#allocation5]
    $region25: #{tpu_custom_call.1} parent=1 // pred_fallthru
      _
    // Predicated region
    $region26: #{tpu_custom_call.1} parent=1 // pred_check
      _
    $region27: #{tpu_custom_call.1} parent=1 // pred_check_branch
      %1749 = sbr.rel (0) target = $region29
    $region28: #{tpu_custom_call.1} parent=1 // pred_region
      %1750 = dma.done [#allocation5], 16
    $region29: #{tpu_custom_call.1} parent=1 // pred_fallthru
      _
    %1751 = vsyncpa [#allocation4], 1
    %1752 = vsyncpa [#allocation5], 1

</llo_original>
